<compile_context>
chip_gen: v7x
topology: tpu7x:2x2x1
jax: 0.10.0
libtpu: 0.0.40
codegen_flags: <defaults>
</compile_context>

<pallas_src>
import jax
import jax.numpy as jnp
from jax import lax
from jax.experimental import pallas as pl
from jax.experimental.pallas import tpu as pltpu


def _upsample_matrix(n_in: int, n_out: int) -> jnp.ndarray:
    """Interpolation matrix U (n_out, n_in) for bilinear, align_corners=True."""
    idx = jnp.arange(n_out, dtype=jnp.float32)
    if n_out > 1 and n_in > 1:
        src = idx * (n_in - 1) / (n_out - 1)
    else:
        src = jnp.zeros_like(idx)
    i0 = jnp.clip(jnp.floor(src).astype(jnp.int32), 0, n_in - 1)
    i1 = jnp.clip(i0 + 1, 0, n_in - 1)
    w1 = src - i0.astype(jnp.float32)
    U = (jax.nn.one_hot(i0, n_in, dtype=jnp.float32) * (1.0 - w1)[:, None]
         + jax.nn.one_hot(i1, n_in, dtype=jnp.float32) * w1[:, None])
    return U


def _up_conv_kernel(x_ref, l_ref, r_ref, b_ref, o_ref, z_ref):
    # x_ref: (H,  W*Cin)        lane-dense input rows, current batch element (batch squeezed)
    # l_ref: (TH2, 3*Hp)        row block of [Left_0 | Left_1 | Left_2] (pre-shifted Uh)
    # r_ref: (W*Cin, 3*W2*Cout) [R_0 | R_1 | R_2]: column-upsample + conv taps + BN scale folded
    # b_ref: (1, W2*Cout)       folded conv-bias + BN bias (kept f32)
    # o_ref: (TH2, W2*Cout)     lane-dense output row block (batch squeezed)
    # z_ref: (3*Hp, W2*Cout)    VMEM scratch; persists across the row-block grid axis
    H = x_ref.shape[0]
    Hp = z_ref.shape[0] // 3
    WCo2 = o_ref.shape[-1]

    # Compute Z once per batch element (row-block axis is the inner, "arbitrary" axis),
    # then reuse it for every output row block.
    @pl.when(pl.program_id(1) == 0)
    def _():
        # One wide matmul for all three vertical taps: (H, W*Cin) @ (W*Cin, 3*W2*Cout).
        z_wide = jnp.dot(x_ref[...], r_ref[...],
                         preferred_element_type=jnp.float32)
        for ky in range(3):
            # Sublane-aligned placement (Hp is a multiple of 8); lane slices are
            # whole-vreg selections (multiples of W2*Cout >= 128).
            z_ref[ky * Hp:ky * Hp + H, :] = (
                z_wide[:, ky * WCo2:(ky + 1) * WCo2].astype(z_ref.dtype))
            if Hp != H:
                z_ref[ky * Hp + H:(ky + 1) * Hp, :] = jnp.zeros(
                    (Hp - H, WCo2), dtype=z_ref.dtype)

    # Row upsample + vertical taps + accumulation over ky as ONE matmul (K = 3*Hp).
    acc = jnp.dot(l_ref[...], z_ref[...], preferred_element_type=jnp.float32)
    acc = acc + b_ref[...]
    o_ref[...] = jnp.maximum(acc, 0.0).astype(o_ref.dtype)


def up_conv_pallas(x_nchw, conv_w_oihw, conv_b, gamma, beta, run_mean, run_var,
                   eps=1e-5, mxu_dtype=jnp.bfloat16, out_dtype=jnp.float32,
                   row_block=None, vmem_limit_bytes=None):
    """Forward pass of Up_Conv. x_nchw: (N, Cin, H, W) -> (N, Cout, 2H, 2W)."""
    N, Cin, H, W = x_nchw.shape
    Cout = conv_w_oihw.shape[0]
    H2, W2 = 2 * H, 2 * W
    WCi = W * Cin
    WCo2 = W2 * Cout

    # Row-block tile over the output rows (inner grid axis).
    th2 = H2 if row_block is None else int(row_block)
    assert H2 % th2 == 0 and (th2 == H2 or th2 % 8 == 0), (H2, th2)
    n_rb = H2 // th2

    # Sublane-aligned per-ky stride inside the Z scratch.
    Hp = H if H % 8 == 0 else ((H + 7) // 8) * 8

    # --- glue (demo only): NCHW -> lane-dense (N, H, W*Cin). Keep this layout across
    #     adjacent layers in a real model to avoid the extra HBM round-trips. ---
    x = jnp.transpose(x_nchw, (0, 2, 3, 1)).reshape(N, H, WCi).astype(jnp.float32)

    # --- interpolation matrices (built in f32) ---
    Uh = _upsample_matrix(H, H2)                                   # (H2, H)
    Uw = _upsample_matrix(W, W2)                                   # (W2, W)

    # --- fold conv bias + eval-mode BatchNorm into weights / bias ---
    scale = gamma / jnp.sqrt(run_var + eps)                        # (Cout,)
    w_hwio = jnp.transpose(conv_w_oihw, (2, 3, 1, 0)).astype(jnp.float32)  # (3,3,Cin,Cout)
    w_s = w_hwio * scale[None, None, None, :]
    bias = conv_b.astype(jnp.float32) * scale + (beta - run_mean * scale)  # (Cout,)
    bias_t = jnp.tile(bias, W2).reshape(1, WCo2).astype(jnp.float32)

    # --- Left operand: vertically pre-shifted row-upsample matrices (zero halo rows),
    #     lane-concatenated: L[:, ky*Hp + h] = Uh[i + ky - 1, h] (0 outside). ---
    zH = jnp.zeros((1, H), jnp.float32)
    Uh_pad = jnp.concatenate([zH, Uh, zH], axis=0)                 # (H2+2, H)
    L = jnp.zeros((H2, 3 * Hp), jnp.float32)
    for ky in range(3):
        L = L.at[:, ky * Hp:ky * Hp + H].set(Uh_pad[ky:ky + H2])

    # --- Right operand: column upsample + horizontal conv taps + BN scale folded:
    #     R_ky[w*Cin+c, j*Cout+o] = sum_kx Uw[j+kx-1, w] * w_s[ky, kx, c, o]. ---
    zW = jnp.zeros((1, W), jnp.float32)
    Uw_pad = jnp.concatenate([zW, Uw, zW], axis=0)                 # (W2+2, W)
    r_blocks = []
    for ky in range(3):
        r = jnp.zeros((WCi, WCo2), jnp.float32)
        for kx in range(3):
            r = r + jnp.kron(Uw_pad[kx:kx + W2].T, w_s[ky, kx])
        r_blocks.append(r)
    R = jnp.concatenate(r_blocks, axis=1)                          # (W*Cin, 3*W2*Cout)

    # MXU operand dtype (bf16 fast path on all generations; f32 accumulation always).
    x_m = x.astype(mxu_dtype)
    L_m = L.astype(mxu_dtype)
    R_m = R.astype(mxu_dtype)

    def _call(single_buffer_invariants: bool):
        # Grid-invariant operands (constant index_map) don't need double buffering.
        inv = dict(pipeline_mode=pl.Buffered(1)) if single_buffer_invariants else {}
        cp = dict(dimension_semantics=("parallel", "arbitrary"))
        if vmem_limit_bytes is not None:
            cp["vmem_limit_bytes"] = int(vmem_limit_bytes)
        fn = pl.pallas_call(
            _up_conv_kernel,
            out_shape=jax.ShapeDtypeStruct((N, H2, WCo2), out_dtype),
            grid_spec=pltpu.PrefetchScalarGridSpec(
                num_scalar_prefetch=0,
                grid=(N, n_rb),
                in_specs=[
                    pl.BlockSpec((pl.Squeezed(), H, WCi), lambda n, r: (n, 0, 0)),
                    pl.BlockSpec((th2, 3 * Hp), lambda n, r: (r, 0)),
                    pl.BlockSpec((WCi, 3 * WCo2), lambda n, r: (0, 0), **inv),
                    pl.BlockSpec((1, WCo2), lambda n, r: (0, 0), **inv),
                ],
                out_specs=pl.BlockSpec((pl.Squeezed(), th2, WCo2),
                                       lambda n, r: (n, r, 0)),
                scratch_shapes=[pltpu.VMEM((3 * Hp, WCo2), mxu_dtype)],
            ),
            compiler_params=pltpu.CompilerParams(**cp),
        )
        return fn(x_m, L_m, R_m, bias_t)

    try:
        out = _call(True)
    except Exception:
        # Fallback if this JAX/Mosaic build rejects pl.Buffered(1) on pallas_call specs.
        out = _call(False)

    # glue (demo only): (N, H2, W2*Cout) -> (N, Cout, H2, W2)
    out = out.reshape(N, H2, W2, Cout)
    return jnp.transpose(out, (0, 3, 1, 2))


def _reference(x_nchw, conv_w_oihw, conv_b, gamma, beta, run_mean, run_var,
               eps=1e-5):
    """Pure-JAX reference (same math, XLA ops) for validation."""
    N, Cin, H, W = x_nchw.shape
    Cout = conv_w_oihw.shape[0]
    H2, W2 = 2 * H, 2 * W
    x = jnp.transpose(x_nchw, (0, 2, 3, 1)).astype(jnp.float32)
    Uh = _upsample_matrix(H, H2)
    Uw = _upsample_matrix(W, W2)
    up = jnp.einsum('ph,nhwc->npwc', Uh, x)
    up = jnp.einsum('qw,npwc->npqc', Uw, up)
    w_hwio = jnp.transpose(conv_w_oihw, (2, 3, 1, 0)).astype(jnp.float32)
    conv = lax.conv_general_dilated(
        up, w_hwio, window_strides=(1, 1), padding='SAME',
        dimension_numbers=('NHWC', 'HWIO', 'NHWC'))
    conv = conv + conv_b.reshape(1, 1, 1, Cout)
    scale = gamma / jnp.sqrt(run_var + eps)
    out = (conv - run_mean.reshape(1, 1, 1, Cout)) * scale.reshape(1, 1, 1, Cout) \
          + beta.reshape(1, 1, 1, Cout)
    out = jnp.maximum(out, 0.0)
    return jnp.transpose(out, (0, 3, 1, 2))


if __name__ == "__main__":
    key = jax.random.PRNGKey(0)
    k_x, k_w, k_b, k_g, k_bt, k_m, k_v = jax.random.split(key, 7)

    N, Cin, Cout, H, W = 2, 4, 8, 16, 16

    x = jax.random.normal(k_x, (N, Cin, H, W), dtype=jnp.float32)
    conv_w = jax.random.normal(k_w, (Cout, Cin, 3, 3), dtype=jnp.float32) * 0.1
    conv_b = jax.random.normal(k_b, (Cout,), dtype=jnp.float32) * 0.1
    gamma = 1.0 + 0.1 * jax.random.normal(k_g, (Cout,), dtype=jnp.float32)
    beta = 0.1 * jax.random.normal(k_bt, (Cout,), dtype=jnp.float32)
    run_mean = 0.1 * jax.random.normal(k_m, (Cout,), dtype=jnp.float32)
    run_var = 1.0 + 0.1 * jnp.abs(jax.random.normal(k_v, (Cout,), dtype=jnp.float32))

    ref = _reference(x, conv_w, conv_b, gamma, beta, run_mean, run_var)

    # f32 MXU path (bit-accuracy check) with the multi-step row-block grid exercised.
    out_f32 = up_conv_pallas(x, conv_w, conv_b, gamma, beta, run_mean, run_var,
                             mxu_dtype=jnp.float32, row_block=16)
    out_f32 = jax.block_until_ready(out_f32)
    assert out_f32.shape == (N, Cout, 2 * H, 2 * W), out_f32.shape
    assert jnp.allclose(out_f32, ref, atol=1e-3, rtol=1e-3), \
        float(jnp.max(jnp.abs(out_f32 - ref)))

    # bf16 MXU path (default fast path on v5e/v6e/v7x): looser tolerance vs f32 reference.
    out_bf16 = up_conv_pallas(x, conv_w, conv_b, gamma, beta, run_mean, run_var,
                              row_block=16)
    out_bf16 = jax.block_until_ready(out_bf16)
    assert out_bf16.shape == (N, Cout, 2 * H, 2 * W), out_bf16.shape
    assert jnp.allclose(out_bf16, ref, atol=1.5e-1, rtol=5e-2), \
        float(jnp.max(jnp.abs(out_bf16 - ref)))

    print("KERNEL_OK")
</pallas_src>

<mosaic_0001>
module attributes {stable_mosaic.version = 11 : i64} {
  func.func @_up_conv_kernel(%arg0: i32, %arg1: i32, %arg2: memref<1x16x64xf32, #tpu.memory_space<vmem>>, %arg3: memref<16x48xf32, #tpu.memory_space<vmem>>, %arg4: memref<64x768xf32, #tpu.memory_space<vmem>>, %arg5: memref<1x256xf32, #tpu.memory_space<vmem>>, %arg6: memref<1x16x256xf32, #tpu.memory_space<vmem>>, %arg7: memref<48x256xf32, #tpu.memory_space<vmem>>) attributes {dimension_semantics = [#tpu.dimension_semantics<parallel>, #tpu.dimension_semantics<arbitrary>], iteration_bounds = array<i64: 2, 2>, scalar_prefetch = 0 : i64, scratch_operands = 1 : i64, tpu.core_type = #tpu.core_type<tc>, window_params = [{transform_indices = @transform_0, window_bounds = array<i64: 1, 16, 64>}, {transform_indices = @transform_1, window_bounds = array<i64: 16, 48>}, {pipeline_mode = #tpu.pipeline_mode<synchronous>, transform_indices = @transform_2, window_bounds = array<i64: 64, 768>}, {pipeline_mode = #tpu.pipeline_mode<synchronous>, transform_indices = @transform_3, window_bounds = array<i64: 1, 256>}, {transform_indices = @transform_4, window_bounds = array<i64: 1, 16, 256>}]} {
    %c0_i32 = arith.constant 0 : i32
    %0 = arith.cmpi eq, %arg1, %c0_i32 : i32
    %1 = arith.extui %0 : i1 to i32
    %c0_i32_0 = arith.constant 0 : i32
    %2 = arith.cmpi ne, %1, %c0_i32_0 : i32
    scf.if %2 {
      %c0_10 = arith.constant 0 : index
      %c0_11 = arith.constant 0 : index
      %c0_12 = arith.constant 0 : index
      %14 = vector.load %arg2[%c0_10, %c0_11, %c0_12] : memref<1x16x64xf32, #tpu.memory_space<vmem>>, vector<1x16x64xf32>
      %15 = vector.shape_cast %14 : vector<1x16x64xf32> to vector<16x64xf32>
      %c0_13 = arith.constant 0 : index
      %c0_14 = arith.constant 0 : index
      %16 = vector.load %arg4[%c0_13, %c0_14] : memref<64x768xf32, #tpu.memory_space<vmem>>, vector<64x768xf32>
      %cst_15 = arith.constant dense<0.000000e+00> : vector<16x768xf32>
      %17 = tpu.matmul %15, %16, %cst_15 {dimension_numbers = #tpu.dot_dimension_numbers<[1], [0], [0], [1], [0, 0, 1, 1], [], []>} : vector<16x64xf32>, vector<64x768xf32>, vector<16x768xf32> -> vector<16x768xf32>
      %18 = vector.extract_strided_slice %17 {offsets = [0, 0], sizes = [16, 256], strides = [1, 1]} : vector<16x768xf32> to vector<16x256xf32>
      %c0_16 = arith.constant 0 : index
      %c0_17 = arith.constant 0 : index
      %19 = vector.load %arg7[%c0_16, %c0_17] : memref<48x256xf32, #tpu.memory_space<vmem>>, vector<16x256xf32>
      tpu.vector_store %arg7[%c0_16, %c0_17], %18 {strides = array<i32>} : memref<48x256xf32, #tpu.memory_space<vmem>>, vector<16x256xf32>,
      %20 = vector.extract_strided_slice %17 {offsets = [0, 256], sizes = [16, 256], strides = [1, 1]} : vector<16x768xf32> to vector<16x256xf32>
      %c16 = arith.constant 16 : index
      %c0_18 = arith.constant 0 : index
      %21 = vector.load %arg7[%c16, %c0_18] : memref<48x256xf32, #tpu.memory_space<vmem>>, vector<16x256xf32>
      tpu.vector_store %arg7[%c16, %c0_18], %20 {strides = array<i32>} : memref<48x256xf32, #tpu.memory_space<vmem>>, vector<16x256xf32>,
      %22 = vector.extract_strided_slice %17 {offsets = [0, 512], sizes = [16, 256], strides = [1, 1]} : vector<16x768xf32> to vector<16x256xf32>
      %c32 = arith.constant 32 : index
      %c0_19 = arith.constant 0 : index
      %23 = vector.load %arg7[%c32, %c0_19] : memref<48x256xf32, #tpu.memory_space<vmem>>, vector<16x256xf32>
      tpu.vector_store %arg7[%c32, %c0_19], %22 {strides = array<i32>} : memref<48x256xf32, #tpu.memory_space<vmem>>, vector<16x256xf32>,
    } else {
    }
    %c0 = arith.constant 0 : index
    %c0_1 = arith.constant 0 : index
    %3 = vector.load %arg3[%c0, %c0_1] : memref<16x48xf32, #tpu.memory_space<vmem>>, vector<16x48xf32>
    %c0_2 = arith.constant 0 : index
    %c0_3 = arith.constant 0 : index
    %4 = vector.load %arg7[%c0_2, %c0_3] : memref<48x256xf32, #tpu.memory_space<vmem>>, vector<48x256xf32>
    %cst = arith.constant dense<0.000000e+00> : vector<16x256xf32>
    %5 = tpu.matmul %3, %4, %cst {dimension_numbers = #tpu.dot_dimension_numbers<[1], [0], [0], [1], [0, 0, 1, 1], [], []>} : vector<16x48xf32>, vector<48x256xf32>, vector<16x256xf32> -> vector<16x256xf32>
    %c0_4 = arith.constant 0 : index
    %c0_5 = arith.constant 0 : index
    %6 = vector.load %arg5[%c0_4, %c0_5] : memref<1x256xf32, #tpu.memory_space<vmem>>, vector<1x256xf32>
    %7 = vector.broadcast %6 : vector<1x256xf32> to vector<16x256xf32>
    %8 = arith.addf %5, %7 : vector<16x256xf32>
    %cst_6 = arith.constant 0.000000e+00 : f32
    %9 = vector.broadcast %cst_6 : f32 to vector<16x256xf32>
    %10 = arith.maximumf %8, %9 : vector<16x256xf32>
    %c0_7 = arith.constant 0 : index
    %c0_8 = arith.constant 0 : index
    %c0_9 = arith.constant 0 : index
    %11 = vector.load %arg6[%c0_7, %c0_8, %c0_9] : memref<1x16x256xf32, #tpu.memory_space<vmem>>, vector<1x16x256xf32>
    %12 = vector.shape_cast %11 : vector<1x16x256xf32> to vector<16x256xf32>
    %13 = vector.shape_cast %10 : vector<16x256xf32> to vector<1x16x256xf32>
    tpu.vector_store %arg6[%c0_7, %c0_8, %c0_9], %13 {strides = array<i32>} : memref<1x16x256xf32, #tpu.memory_space<vmem>>, vector<1x16x256xf32>,
    return
  }
  func.func @transform_0(%arg0: i32, %arg1: i32) -> (i32, i32, i32) {
    %c0_i32 = arith.constant 0 : i32
    %c0_i32_0 = arith.constant 0 : i32
    %c0_i32_1 = arith.constant 0 : i32
    return %arg0, %c0_i32, %c0_i32_0 : i32, i32, i32
  }
  func.func @transform_1(%arg0: i32, %arg1: i32) -> (i32, i32) {
    %c0_i32 = arith.constant 0 : i32
    %c0_i32_0 = arith.constant 0 : i32
    return %arg1, %c0_i32 : i32, i32
  }
  func.func @transform_2(%arg0: i32, %arg1: i32) -> (i32, i32) {
    %c0_i32 = arith.constant 0 : i32
    %c0_i32_0 = arith.constant 0 : i32
    %c0_i32_1 = arith.constant 0 : i32
    return %c0_i32, %c0_i32_0 : i32, i32
  }
  func.func @transform_3(%arg0: i32, %arg1: i32) -> (i32, i32) {
    %c0_i32 = arith.constant 0 : i32
    %c0_i32_0 = arith.constant 0 : i32
    %c0_i32_1 = arith.constant 0 : i32
    return %c0_i32, %c0_i32_0 : i32, i32
  }
  func.func @transform_4(%arg0: i32, %arg1: i32) -> (i32, i32, i32) {
    %c0_i32 = arith.constant 0 : i32
    %c0_i32_0 = arith.constant 0 : i32
    return %arg0, %arg1, %c0_i32 : i32, i32, i32
  }
}

module attributes {stable_mosaic.version = 11 : i64} {
  func.func @_up_conv_kernel(%arg0: i32, %arg1: i32, %arg2: memref<1x16x64xf32, #tpu.memory_space<vmem>>, %arg3: memref<16x48xf32, #tpu.memory_space<vmem>>, %arg4: memref<64x768xf32, #tpu.memory_space<vmem>>, %arg5: memref<1x256xf32, #tpu.memory_space<vmem>>, %arg6: memref<1x16x256xf32, #tpu.memory_space<vmem>>, %arg7: memref<48x256xf32, #tpu.memory_space<vmem>>) attributes {dimension_semantics = [#tpu.dimension_semantics<parallel>, #tpu.dimension_semantics<arbitrary>], iteration_bounds = array<i64: 2, 2>, scalar_prefetch = 0 : i64, scratch_operands = 1 : i64, tpu.core_type = #tpu.core_type<tc>, window_params = [{transform_indices = @transform_0, window_bounds = array<i64: 1, 16, 64>}, {transform_indices = @transform_1, window_bounds = array<i64: 16, 48>}, {pipeline_mode = #tpu.pipeline_mode<synchronous>, transform_indices = @transform_2, window_bounds = array<i64: 64, 768>}, {pipeline_mode = #tpu.pipeline_mode<synchronous>, transform_indices = @transform_3, window_bounds = array<i64: 1, 256>}, {transform_indices = @transform_4, window_bounds = array<i64: 1, 16, 256>}]} {
    %c0_i32 = arith.constant 0 : i32
    %0 = arith.cmpi eq, %arg1, %c0_i32 : i32
    %1 = arith.extui %0 : i1 to i32
    %c0_i32_0 = arith.constant 0 : i32
    %2 = arith.cmpi ne, %1, %c0_i32_0 : i32
    scf.if %2 {
      %c0_10 = arith.constant 0 : index
      %c0_11 = arith.constant 0 : index
      %c0_12 = arith.constant 0 : index
      %14 = vector.load %arg2[%c0_10, %c0_11, %c0_12] : memref<1x16x64xf32, #tpu.memory_space<vmem>>, vector<1x16x64xf32>
      %15 = vector.shape_cast %14 : vector<1x16x64xf32> to vector<16x64xf32>
      %c0_13 = arith.constant 0 : index
      %c0_14 = arith.constant 0 : index
      %16 = vector.load %arg4[%c0_13, %c0_14] : memref<64x768xf32, #tpu.memory_space<vmem>>, vector<64x768xf32>
      %cst_15 = arith.constant dense<0.000000e+00> : vector<16x768xf32>
      %17 = tpu.matmul %15, %16, %cst_15 {dimension_numbers = #tpu.dot_dimension_numbers<[1], [0], [0], [1], [0, 0, 1, 1], [], []>} : vector<16x64xf32>, vector<64x768xf32>, vector<16x768xf32> -> vector<16x768xf32>
      %18 = vector.extract_strided_slice %17 {offsets = [0, 0], sizes = [16, 256], strides = [1, 1]} : vector<16x768xf32> to vector<16x256xf32>
      %c0_16 = arith.constant 0 : index
      %c0_17 = arith.constant 0 : index
      %19 = vector.load %arg7[%c0_16, %c0_17] : memref<48x256xf32, #tpu.memory_space<vmem>>, vector<16x256xf32>
      tpu.vector_store %arg7[%c0_16, %c0_17], %18 {strides = array<i32>} : memref<48x256xf32, #tpu.memory_space<vmem>>, vector<16x256xf32>,
      %20 = vector.extract_strided_slice %17 {offsets = [0, 256], sizes = [16, 256], strides = [1, 1]} : vector<16x768xf32> to vector<16x256xf32>
      %c16 = arith.constant 16 : index
      %c0_18 = arith.constant 0 : index
      %21 = vector.load %arg7[%c16, %c0_18] : memref<48x256xf32, #tpu.memory_space<vmem>>, vector<16x256xf32>
      tpu.vector_store %arg7[%c16, %c0_18], %20 {strides = array<i32>} : memref<48x256xf32, #tpu.memory_space<vmem>>, vector<16x256xf32>,
      %22 = vector.extract_strided_slice %17 {offsets = [0, 512], sizes = [16, 256], strides = [1, 1]} : vector<16x768xf32> to vector<16x256xf32>
      %c32 = arith.constant 32 : index
      %c0_19 = arith.constant 0 : index
      %23 = vector.load %arg7[%c32, %c0_19] : memref<48x256xf32, #tpu.memory_space<vmem>>, vector<16x256xf32>
      tpu.vector_store %arg7[%c32, %c0_19], %22 {strides = array<i32>} : memref<48x256xf32, #tpu.memory_space<vmem>>, vector<16x256xf32>,
    } else {
    }
    %c0 = arith.constant 0 : index
    %c0_1 = arith.constant 0 : index
    %3 = vector.load %arg3[%c0, %c0_1] : memref<16x48xf32, #tpu.memory_space<vmem>>, vector<16x48xf32>
    %c0_2 = arith.constant 0 : index
    %c0_3 = arith.constant 0 : index
    %4 = vector.load %arg7[%c0_2, %c0_3] : memref<48x256xf32, #tpu.memory_space<vmem>>, vector<48x256xf32>
    %cst = arith.constant dense<0.000000e+00> : vector<16x256xf32>
    %5 = tpu.matmul %3, %4, %cst {dimension_numbers = #tpu.dot_dimension_numbers<[1], [0], [0], [1], [0, 0, 1, 1], [], []>} : vector<16x48xf32>, vector<48x256xf32>, vector<16x256xf32> -> vector<16x256xf32>
    %c0_4 = arith.constant 0 : index
    %c0_5 = arith.constant 0 : index
    %6 = vector.load %arg5[%c0_4, %c0_5] : memref<1x256xf32, #tpu.memory_space<vmem>>, vector<1x256xf32>
    %7 = vector.broadcast %6 : vector<1x256xf32> to vector<16x256xf32>
    %8 = arith.addf %5, %7 : vector<16x256xf32>
    %cst_6 = arith.constant 0.000000e+00 : f32
    %9 = vector.broadcast %cst_6 : f32 to vector<16x256xf32>
    %10 = arith.maximumf %8, %9 : vector<16x256xf32>
    %c0_7 = arith.constant 0 : index
    %c0_8 = arith.constant 0 : index
    %c0_9 = arith.constant 0 : index
    %11 = vector.load %arg6[%c0_7, %c0_8, %c0_9] : memref<1x16x256xf32, #tpu.memory_space<vmem>>, vector<1x16x256xf32>
    %12 = vector.shape_cast %11 : vector<1x16x256xf32> to vector<16x256xf32>
    %13 = vector.shape_cast %10 : vector<16x256xf32> to vector<1x16x256xf32>
    tpu.vector_store %arg6[%c0_7, %c0_8, %c0_9], %13 {strides = array<i32>} : memref<1x16x256xf32, #tpu.memory_space<vmem>>, vector<1x16x256xf32>,
    return
  }
  func.func @transform_0(%arg0: i32, %arg1: i32) -> (i32, i32, i32) {
    %c0_i32 = arith.constant 0 : i32
    %c0_i32_0 = arith.constant 0 : i32
    %c0_i32_1 = arith.constant 0 : i32
    return %arg0, %c0_i32, %c0_i32_0 : i32, i32, i32
  }
  func.func @transform_1(%arg0: i32, %arg1: i32) -> (i32, i32) {
    %c0_i32 = arith.constant 0 : i32
    %c0_i32_0 = arith.constant 0 : i32
    return %arg1, %c0_i32 : i32, i32
  }
  func.func @transform_2(%arg0: i32, %arg1: i32) -> (i32, i32) {
    %c0_i32 = arith.constant 0 : i32
    %c0_i32_0 = arith.constant 0 : i32
    %c0_i32_1 = arith.constant 0 : i32
    return %c0_i32, %c0_i32_0 : i32, i32
  }
  func.func @transform_3(%arg0: i32, %arg1: i32) -> (i32, i32) {
    %c0_i32 = arith.constant 0 : i32
    %c0_i32_0 = arith.constant 0 : i32
    %c0_i32_1 = arith.constant 0 : i32
    return %c0_i32, %c0_i32_0 : i32, i32
  }
  func.func @transform_4(%arg0: i32, %arg1: i32) -> (i32, i32, i32) {
    %c0_i32 = arith.constant 0 : i32
    %c0_i32_0 = arith.constant 0 : i32
    return %arg0, %arg1, %c0_i32 : i32, i32, i32
  }
}

</mosaic_0001>

<llo_original>
// kernel: tpu_custom_call.1
$region0: #{tpu_custom_call.1}
  #allocation0 [shape = 'u32[]', space=smem, size = 0x4, offset = 0x4, fixed_abs, tag = 'smem constant byte address 0x4 - core index']
  #allocation1 [shape = 'u32[144,128]{1,0:T(1,128)}', space=vmem, size = 0x12000, scoped, tag = 'internal scratch']
  #allocation2 [shape = 'f32[48,256]{1,0:T(8,128)}', space=vmem, size = 0xc000, scoped, tag = 'scratch operand']
  %s0 = inlined_call_operand.hbm [shape: f32[2,16,64], index: 0, kind: input, shape index: {}]
  %s1 = inlined_call_operand.hbm [shape: f32[32,48], index: 1, kind: input, shape index: {}]
  %s2 = inlined_call_operand.hbm [shape: f32[64,768], index: 2, kind: input, shape index: {}]
  %s3 = inlined_call_operand.vmem [shape: f32[1,256], index: 3, kind: input, shape index: {}]
  %s4 = inlined_call_operand.hbm [shape: f32[2,32,256], index: 4, kind: output, shape index: {}]
  %s5 = sld [smem:[#allocation0]]
  $region65: #{tpu_custom_call.1} parent=0
    _
  %s7 = ssub.s32 1, %s5
  %s8 = scalar_select 0, %s7, %s5
  $region1: #{tpu_custom_call.1} parent=0
    #allocation3 [shape = 'u8[16384]{0}', space=vmem, size = 0x4000, scoped, tag = 'input window, operand 0']
    #allocation4 [shape = 's32[2]{0}', space=sflag, size = 0x8, scoped, tag = 'scoped memory for tpu_custom_call.1']
    #allocation5 [shape = 's32[2]{0}', space=sflag, size = 0x8, scoped, tag = 'scoped memory for tpu_custom_call.1']
    #allocation6 [shape = 'u8[16384]{0}', space=vmem, size = 0x4000, scoped, tag = 'input window, operand 1']
    #allocation7 [shape = 's32[2]{0}', space=sflag, size = 0x8, scoped, tag = 'scoped memory for tpu_custom_call.1']
    #allocation8 [shape = 'u8[196608]{0}', space=vmem, size = 0x30000, scoped, tag = 'input window, operand 2, single buffered']
    #allocation9 [shape = 'u8[32768]{0}', space=vmem, size = 0x8000, scoped, tag = 'output window, operand 0']
    %9 = vsyncpa [#allocation4], 0
    %s10 = scalar_lea.sflag [#allocation4], 1
    %11 = vsyncpa %s10, 0
    %12 = vsyncpa [#allocation7], 0
    %s13 = scalar_lea.sflag [#allocation7], 1
    %14 = vsyncpa %s13, 0
    %15 = vsyncpa [#allocation5], 0
    %s16 = scalar_lea.sflag [#allocation5], 1
    %17 = vsyncpa %s16, 0
    loop: start=0, step=1, limit=6
    $region2: #{tpu_custom_call.1} parent=1 // loop_pre_header
      _
    $region3: #{tpu_custom_call.1} parent=1 // loop_header
      %s19 = sphi 0, %s23
      %p20 = scmp.ge.s32.totalorder %s19, 6
      %s26 = sphi 0, %s38
      %s27 = sphi 0, %s34
      %s28 = sphi 0, %s26
      %s29 = sphi 0, %s27
      %s30 = sphi 0, %s28
      %s31 = sphi 0, %s29
      %s41 = sphi 0, %s43
      %s44 = sphi 0, %s41
      %s45 = sphi 0, %s44
      %s61 = sphi 0, %s45
      %s67 = sphi 0, %s69
      %s70 = sphi 0, %s67
      %s71 = sphi 0, %s70
      %s87 = sphi 0, %s71
      %s91 = sphi 0, %s91
      %s93 = sphi 0, %s91
      %s94 = sphi 0, %s93
      %s108 = sphi 0, %s94
      %s112 = sphi 0, %s112
      %s114 = sphi 0, %s112
      %s115 = sphi 0, %s114
      %s129 = sphi 0, %s115
      %s137 = sphi 0, %s139
      %s140 = sphi 0, %s137
      %s141 = sphi 0, %s140
      %s157 = sphi 0, %s141
    $region4: #{tpu_custom_call.1} parent=1 // loop_header_branch
      %22 = sbr.rel (%p20) target = $region8
    $region5: #{tpu_custom_call.1} parent=1 // loop_body
      %s24 = ssub.s32 %s19, 1
      %s25 = ssub.s32 %s19, 2
      %s32 = sadd.s32 1, %s27
      %p33 = scmp.ge.s32.totalorder %s32, 2
      %s34 = scalar_select %p33, 0, %s32
      %s35 = sadd.s32 1, %s26
      %s36 = scalar_select %p33, %s35, %s26
      %p37 = scmp.ge.s32.totalorder %s36, 2
      %s38 = scalar_select %p37, 0, %s36
      %s39 = ssub.s32 %s26, %s38
      %p40 = scmp.eq.s32.totalorder %s39, 0
      %s42 = sadd.s32 %s41, 1
      %s43 = scalar_select %p40, %s41, %s42
      %p46 = pneg %p40
      %p47 = scmp.eq.s32.totalorder %s19, 3
      %p48 = por %p46, %p47
      %p49 = scmp.ne.s32.totalorder %s41, %s44
      %p50 = scmp.eq.s32.totalorder %s19, 0
      %p51 = por %p49, %p50
      %p52 = scmp.ne.s32.totalorder %s41, %s44
      %p53 = scmp.eq.s32.totalorder %s24, 3
      %p54 = por %p52, %p53
      %p55 = scmp.ne.s32.totalorder %s44, %s45
      %p56 = scmp.eq.s32.totalorder %s24, 0
      %p57 = por %p55, %p56
      %p58 = scmp.ne.s32.totalorder %s44, %s45
      %p59 = scmp.eq.s32.totalorder %s25, 3
      %p60 = por %p58, %p59
      %p62 = scmp.ne.s32.totalorder %s45, %s61
      %p63 = scmp.eq.s32.totalorder %s25, 0
      %p64 = por %p62, %p63
      %s65 = ssub.s32 %s27, %s34
      %p66 = scmp.eq.s32.totalorder %s65, 0
      %s68 = sadd.s32 %s67, 1
      %s69 = scalar_select %p66, %s67, %s68
      %p72 = pneg %p66
      %p73 = scmp.eq.s32.totalorder %s19, 3
      %p74 = por %p72, %p73
      %p75 = scmp.ne.s32.totalorder %s67, %s70
      %p76 = scmp.eq.s32.totalorder %s19, 0
      %p77 = por %p75, %p76
      %p78 = scmp.ne.s32.totalorder %s67, %s70
      %p79 = scmp.eq.s32.totalorder %s24, 3
      %p80 = por %p78, %p79
      %p81 = scmp.ne.s32.totalorder %s70, %s71
      %p82 = scmp.eq.s32.totalorder %s24, 0
      %p83 = por %p81, %p82
      %p84 = scmp.ne.s32.totalorder %s70, %s71
      %p85 = scmp.eq.s32.totalorder %s25, 3
      %p86 = por %p84, %p85
      %p88 = scmp.ne.s32.totalorder %s71, %s87
      %p89 = scmp.eq.s32.totalorder %s25, 0
      %p90 = por %p88, %p89
      %s92 = sadd.s32 %s91, 1
      %p95 = scmp.eq.s32.totalorder %s19, 3
      %p96 = scmp.ne.s32.totalorder %s91, %s93
      %p97 = scmp.eq.s32.totalorder %s19, 0
      %p98 = por %p96, %p97
      %p99 = scmp.ne.s32.totalorder %s91, %s93
      %p100 = scmp.eq.s32.totalorder %s24, 3
      %p101 = por %p99, %p100
      %p102 = scmp.ne.s32.totalorder %s93, %s94
      %p103 = scmp.eq.s32.totalorder %s24, 0
      %p104 = por %p102, %p103
      %p105 = scmp.ne.s32.totalorder %s93, %s94
      %p106 = scmp.eq.s32.totalorder %s25, 3
      %p107 = por %p105, %p106
      %p109 = scmp.ne.s32.totalorder %s94, %s108
      %p110 = scmp.eq.s32.totalorder %s25, 0
      %p111 = por %p109, %p110
      %s113 = sadd.s32 %s112, 1
      %p116 = scmp.eq.s32.totalorder %s19, 3
      %p117 = scmp.ne.s32.totalorder %s112, %s114
      %p118 = scmp.eq.s32.totalorder %s19, 0
      %p119 = por %p117, %p118
      %p120 = scmp.ne.s32.totalorder %s112, %s114
      %p121 = scmp.eq.s32.totalorder %s24, 3
      %p122 = por %p120, %p121
      %p123 = scmp.ne.s32.totalorder %s114, %s115
      %p124 = scmp.eq.s32.totalorder %s24, 0
      %p125 = por %p123, %p124
      %p126 = scmp.ne.s32.totalorder %s114, %s115
      %p127 = scmp.eq.s32.totalorder %s25, 3
      %p128 = por %p126, %p127
      %p130 = scmp.ne.s32.totalorder %s115, %s129
      %p131 = scmp.eq.s32.totalorder %s25, 0
      %p132 = por %p130, %p131
      %s133 = ssub.s32 %s26, %s38
      %s134 = ssub.s32 %s27, %s34
      %s135 = sor.u32 %s133, %s134
      %p136 = scmp.eq.s32.totalorder %s135, 0
      %s138 = sadd.s32 %s137, 1
      %s139 = scalar_select %p136, %s137, %s138
      %p142 = pneg %p136
      %p143 = scmp.eq.s32.totalorder %s19, 3
      %p144 = por %p142, %p143
      %p145 = scmp.ne.s32.totalorder %s137, %s140
      %p146 = scmp.eq.s32.totalorder %s19, 0
      %p147 = por %p145, %p146
      %p148 = scmp.ne.s32.totalorder %s137, %s140
      %p149 = scmp.eq.s32.totalorder %s24, 3
      %p150 = por %p148, %p149
      %p151 = scmp.ne.s32.totalorder %s140, %s141
      %p152 = scmp.eq.s32.totalorder %s24, 0
      %p153 = por %p151, %p152
      %p154 = scmp.ne.s32.totalorder %s140, %s141
      %p155 = scmp.eq.s32.totalorder %s25, 3
      %p156 = por %p154, %p155
      %p158 = scmp.ne.s32.totalorder %s141, %s157
      %p159 = scmp.eq.s32.totalorder %s25, 0
      %p160 = por %p158, %p159
      %p161 = scmp.le.s32.totalorder 1, %s19
      %p162 = scmp.lt.s32.totalorder %s19, 5
      %p163 = pnand %p161, %p162
      %p164 = pneg %p163
      // Predicated region
      $region9: #{tpu_custom_call.1} parent=5 // pred_check
        _
      $region10: #{tpu_custom_call.1} parent=5 // pred_check_branch
        %166 = sbr.rel (%p163) target = $region12
      $region11: #{tpu_custom_call.1} parent=5 // pred_region
        %s167 = ssub.s32 %s19, 1
        // Predicated region
        $region13: #{tpu_custom_call.1} parent=11 // pred_check
          %p168 = pneg %p104
        $region14: #{tpu_custom_call.1} parent=11 // pred_check_branch
          %170 = sbr.rel (%p168) target = $region16
        $region15: #{tpu_custom_call.1} parent=11 // pred_region
          %s172 = ssub.s32 6144, 6144
          %173 = vsyncadd [#allocation7], %s172
          %s174 = sshll.u32 [#allocation8], 4
          %s175 = int_to_ptr.vmem [resolvable:$true] %s174
          %180 = dma.hbm_to_vmem [thread:$0]  %s2, 6144, %s175, [#allocation7], 768, 768, 48
        $region16: #{tpu_custom_call.1} parent=11 // pred_fallthru
          _
        // Predicated region
        $region17: #{tpu_custom_call.1} parent=11 // pred_check
          %p181 = pneg %p125
        $region18: #{tpu_custom_call.1} parent=11 // pred_check_branch
          %183 = sbr.rel (%p181) target = $region20
        $region19: #{tpu_custom_call.1} parent=11 // pred_region
          _
        $region20: #{tpu_custom_call.1} parent=11 // pred_fallthru
          _
      $region12: #{tpu_custom_call.1} parent=5 // pred_fallthru
        _
      %p184 = scmp.lt.s32.totalorder %s19, 4
      // Predicated region
      $region21: #{tpu_custom_call.1} parent=5 // pred_check
        %p185 = pneg %p184
      $region22: #{tpu_custom_call.1} parent=5 // pred_check_branch
        %187 = sbr.rel (%p185) target = $region24
      $region23: #{tpu_custom_call.1} parent=5 // pred_region
        // Predicated region
        $region25: #{tpu_custom_call.1} parent=23 // pred_check
          %p188 = pneg %p51
        $region26: #{tpu_custom_call.1} parent=23 // pred_check_branch
          %190 = sbr.rel (%p188) target = $region28
        $region27: #{tpu_custom_call.1} parent=23 // pred_region
          %s191 = sand.u32 %s41, 1
          %s192 = scalar_lea.sflag [#allocation4], %s191
          %s193 = sand.u32 %s41, 1
          %s194 = smul.addr %s193, 16
          %s195 = scalar_lea.vmem [#allocation3], %s194
          %s197 = ssub.s32 256, 256
          %198 = vsyncadd %s192, %s197
          %s199 = smul.addr %s26, 2
          %s200 = smul.addr %s199, 128
          %s201 = scalar_lea.hbm %s0, %s200
          %s202 = sshll.u32 %s195, 4
          %s203 = int_to_ptr.vmem [resolvable:$true] %s202
          %208 = dma.hbm_to_vmem [thread:$0]  %s201, 256, %s203, %s192, 128, 128, 8
        $region28: #{tpu_custom_call.1} parent=23 // pred_fallthru
          _
        // Predicated region
        $region29: #{tpu_custom_call.1} parent=23 // pred_check
          %p209 = pneg %p77
        $region30: #{tpu_custom_call.1} parent=23 // pred_check_branch
          %211 = sbr.rel (%p209) target = $region32
        $region31: #{tpu_custom_call.1} parent=23 // pred_region
          %s212 = sand.u32 %s19, 1
          %s213 = scalar_lea.sflag [#allocation7], %s212
          %s214 = sand.u32 %s67, 1
          %s215 = smul.addr %s214, 16
          %s216 = scalar_lea.vmem [#allocation6], %s215
          %s217 = smul.u32 2, %s27
          %s219 = ssub.s32 256, 256
          %220 = vsyncadd %s213, %s219
          %s221 = smul.addr %s217, 128
          %s222 = scalar_lea.hbm %s1, %s221
          %s223 = sshll.u32 %s216, 4
          %s224 = int_to_ptr.vmem [resolvable:$true] %s223
          %229 = dma.hbm_to_vmem [thread:$0]  %s222, 256, %s224, %s213, 128, 128, 8
        $region32: #{tpu_custom_call.1} parent=23 // pred_fallthru
          _
      $region24: #{tpu_custom_call.1} parent=5 // pred_fallthru
        _
      %p230 = scmp.le.s32.totalorder 1, %s19
      %p231 = scmp.lt.s32.totalorder %s19, 5
      %p232 = pnand %p230, %p231
      %p233 = pneg %p232
      // Predicated region
      $region33: #{tpu_custom_call.1} parent=5 // pred_check
        _
      $region34: #{tpu_custom_call.1} parent=5 // pred_check_branch
        %235 = sbr.rel (%p232) target = $region36
      $region35: #{tpu_custom_call.1} parent=5 // pred_region
        %s236 = ssub.s32 %s19, 1
        %s237 = sand.u32 %s44, 1
        %s238 = scalar_lea.sflag [#allocation4], %s237
        %s239 = sand.u32 %s44, 1
        %s240 = smul.addr %s239, 16
        %s241 = scalar_lea.vmem [#allocation3], %s240
        // Predicated region
        $region37: #{tpu_custom_call.1} parent=35 // pred_check
          %p242 = pneg %p57
        $region38: #{tpu_custom_call.1} parent=35 // pred_check_branch
          %244 = sbr.rel (%p242) target = $region40
        $region39: #{tpu_custom_call.1} parent=35 // pred_region
          %245 = dma.done %s238, 256
        $region40: #{tpu_custom_call.1} parent=35 // pred_fallthru
          _
        %s246 = sand.u32 %s24, 1
        %s247 = scalar_lea.sflag [#allocation7], %s246
        %s248 = sand.u32 %s70, 1
        %s249 = smul.addr %s248, 16
        %s250 = scalar_lea.vmem [#allocation6], %s249
        // Predicated region
        $region41: #{tpu_custom_call.1} parent=35 // pred_check
          %p251 = pneg %p83
        $region42: #{tpu_custom_call.1} parent=35 // pred_check_branch
          %253 = sbr.rel (%p251) target = $region44
        $region43: #{tpu_custom_call.1} parent=35 // pred_region
          %254 = dma.done %s247, 256
        $region44: #{tpu_custom_call.1} parent=35 // pred_fallthru
          _
        // Predicated region
        $region45: #{tpu_custom_call.1} parent=35 // pred_check
          %p255 = pneg %p104
        $region46: #{tpu_custom_call.1} parent=35 // pred_check_branch
          %257 = sbr.rel (%p255) target = $region48
        $region47: #{tpu_custom_call.1} parent=35 // pred_region
          %258 = dma.done [#allocation7], 6144
        $region48: #{tpu_custom_call.1} parent=35 // pred_fallthru
          _
        %s259 = sand.u32 %s44, 1
        %s260 = scalar_lea.sflag [#allocation4], %s259
        %s261 = sand.u32 %s44, 1
        %s262 = smul.addr %s261, 16
        %s263 = scalar_lea.vmem [#allocation3], %s262
        %p264 = pneg %p57
        %p265 = pneg %p54
        %s266 = sand.u32 %s24, 1
        %s267 = scalar_lea.sflag [#allocation7], %s266
        %s268 = sand.u32 %s70, 1
        %s269 = smul.addr %s268, 16
        %s270 = scalar_lea.vmem [#allocation6], %s269
        %p271 = pneg %p83
        %p272 = pneg %p80
        %p273 = pneg %p104
        %p274 = pneg %p101
        %p275 = pneg %p125
        %p276 = pneg %p122
        %p277 = pneg %p153
        %p278 = pneg %p150
        %s279 = sand.u32 %s140, 1
        %s280 = scalar_lea.sflag [#allocation5], %s279
        %s281 = sand.u32 %s140, 1
        %s282 = smul.addr %s281, 32
        %s283 = scalar_lea.vmem [#allocation9], %s282
        %s284 = smul.u32 2, %s29
        %s285 = smul.u32 2, %s29
        %p286 = scmp.eq.s32.totalorder %s29, 0
        // Predicated region
        $region49: #{tpu_custom_call.1} parent=35 // pred_check
          %p287 = pneg %p286
        $region50: #{tpu_custom_call.1} parent=35 // pred_check_branch
          %289 = sbr.rel (%p287) target = $region52
        $region51: #{tpu_custom_call.1} parent=35 // pred_region
          %v290 = vld [vmem:[%s241] sm:$0xff]
          %v291 = vld [vmem:[%s241 + $0x8] sm:$0xff]
          %v292 = vld [vmem:[#allocation8] sm:$0xff]
          %v293 = vld [vmem:[#allocation8 + $0x8] sm:$0xff]
          %v294 = vld [vmem:[#allocation8 + $0x10] sm:$0xff]
          %v295 = vld [vmem:[#allocation8 + $0x18] sm:$0xff]
          %v296 = vld [vmem:[#allocation8 + $0x20] sm:$0xff]
          %v297 = vld [vmem:[#allocation8 + $0x28] sm:$0xff]
          %v298 = vld [vmem:[#allocation8 + $0x30] sm:$0xff]
          %v299 = vld [vmem:[#allocation8 + $0x38] sm:$0xff]
          %v300 = vld [vmem:[#allocation8 + $0x40] sm:$0xff]
          %v301 = vld [vmem:[#allocation8 + $0x48] sm:$0xff]
          %v302 = vld [vmem:[#allocation8 + $0x50] sm:$0xff]
          %v303 = vld [vmem:[#allocation8 + $0x58] sm:$0xff]
          %v304 = vld [vmem:[#allocation8 + $0x60] sm:$0xff]
          %v305 = vld [vmem:[#allocation8 + $0x68] sm:$0xff]
          %v306 = vld [vmem:[#allocation8 + $0x70] sm:$0xff]
          %v307 = vld [vmem:[#allocation8 + $0x78] sm:$0xff]
          %v308 = vld [vmem:[#allocation8 + $0x80] sm:$0xff]
          %v309 = vld [vmem:[#allocation8 + $0x88] sm:$0xff]
          %v310 = vld [vmem:[#allocation8 + $0x90] sm:$0xff]
          %v311 = vld [vmem:[#allocation8 + $0x98] sm:$0xff]
          %v312 = vld [vmem:[#allocation8 + $0xa0] sm:$0xff]
          %v313 = vld [vmem:[#allocation8 + $0xa8] sm:$0xff]
          %v314 = vld [vmem:[#allocation8 + $0xb0] sm:$0xff]
          %v315 = vld [vmem:[#allocation8 + $0xb8] sm:$0xff]
          %v316 = vld [vmem:[#allocation8 + $0xc0] sm:$0xff]
          %v317 = vld [vmem:[#allocation8 + $0xc8] sm:$0xff]
          %v318 = vld [vmem:[#allocation8 + $0xd0] sm:$0xff]
          %v319 = vld [vmem:[#allocation8 + $0xd8] sm:$0xff]
          %v320 = vld [vmem:[#allocation8 + $0xe0] sm:$0xff]
          %v321 = vld [vmem:[#allocation8 + $0xe8] sm:$0xff]
          %v322 = vld [vmem:[#allocation8 + $0xf0] sm:$0xff]
          %v323 = vld [vmem:[#allocation8 + $0xf8] sm:$0xff]
          %v324 = vld [vmem:[#allocation8 + $0x100] sm:$0xff]
          %v325 = vld [vmem:[#allocation8 + $0x108] sm:$0xff]
          %v326 = vld [vmem:[#allocation8 + $0x110] sm:$0xff]
          %v327 = vld [vmem:[#allocation8 + $0x118] sm:$0xff]
          %v328 = vld [vmem:[#allocation8 + $0x120] sm:$0xff]
          %v329 = vld [vmem:[#allocation8 + $0x128] sm:$0xff]
          %v330 = vld [vmem:[#allocation8 + $0x130] sm:$0xff]
          %v331 = vld [vmem:[#allocation8 + $0x138] sm:$0xff]
          %v332 = vld [vmem:[#allocation8 + $0x140] sm:$0xff]
          %v333 = vld [vmem:[#allocation8 + $0x148] sm:$0xff]
          %v334 = vld [vmem:[#allocation8 + $0x150] sm:$0xff]
          %v335 = vld [vmem:[#allocation8 + $0x158] sm:$0xff]
          %v336 = vld [vmem:[#allocation8 + $0x160] sm:$0xff]
          %v337 = vld [vmem:[#allocation8 + $0x168] sm:$0xff]
          %v338 = vld [vmem:[#allocation8 + $0x170] sm:$0xff]
          %v339 = vld [vmem:[#allocation8 + $0x178] sm:$0xff]
          %vm340 = vcmask 523264
          %v342 = vsel %vm340, %v290, 0
          %v345 = vsel %vm340, %v291, 0
          %347 = vmatprep.subr.mxu0 %v293
          %348 = vmatpush1.msra.mxu0 %v292
          %349 = vmatprep.subr.mxu0 %v299
          %350 = vmatpush1.msra.mxu0 %v298
          %351 = vmatprep.subr.mxu0 %v305
          %352 = vmatpush1.msra.mxu0 %v304
          %353 = vmatprep.subr.mxu0 %v311
          %354 = vmatpush1.msra.mxu0 %v310
          %355 = vmatprep.subr.mxu0 %v317
          %356 = vmatpush1.msra.mxu0 %v316
          %357 = vmatprep.subr.mxu0 %v323
          %358 = vmatpush1.msra.mxu0 %v322
          %359 = vmatprep.subr.mxu0 %v329
          %360 = vmatpush1.msra.mxu0 %v328
          %361 = vmatprep.subr.mxu0 %v335
          %362 = vmatpush1.msra.mxu0 %v334
          %363 = vmatprep.subr.mxu0 0.0
          %364 = vmatpush1.msra.mxu0 0.0
          %365 = vmatprep.subr.mxu0 0.0
          %366 = vmatpush1.msra.mxu0 0.0
          %367 = vmatprep.subr.mxu0 0.0
          %368 = vmatpush1.msra.mxu0 0.0
          %369 = vmatprep.subr.mxu0 0.0
          %370 = vmatpush1.msra.mxu0 0.0
          %371 = vmatprep.subr.mxu0 0.0
          %372 = vmatpush1.msra.mxu0 0.0
          %373 = vmatprep.subr.mxu0 0.0
          %374 = vmatpush1.msra.mxu0 0.0
          %375 = vmatprep.subr.mxu0 0.0
          %376 = vmatpush1.msra.mxu0 0.0
          %377 = vmatprep.subr.mxu0 0.0
          %378 = vmatpush1.msra.mxu0 0.0
          %379 = vmatprep.subr.mxu0 0.0
          %380 = vmatpush1.msra.mxu0 0.0
          %381 = vmatprep.subr.mxu0 0.0
          %382 = vmatpush1.msra.mxu0 0.0
          %383 = vmatprep.subr.mxu0 0.0
          %384 = vmatpush1.msra.mxu0 0.0
          %385 = vmatprep.subr.mxu0 0.0
          %386 = vmatpush1.msra.mxu0 0.0
          %387 = vmatprep.subr.mxu0 0.0
          %388 = vmatpush1.msra.mxu0 0.0
          %389 = vmatprep.subr.mxu0 0.0
          %390 = vmatpush1.msra.mxu0 0.0
          %391 = vmatprep.subr.mxu0 0.0
          %392 = vmatpush1.msra.mxu0 0.0
          %393 = vmatprep.subr.mxu0 0.0
          %394 = vmatpush1.msra.mxu0 0.0
          %395 = vmatprep.subr.mxu0 0.0
          %396 = vmatpush1.msra.mxu0 0.0
          %397 = vmatprep.subr.mxu0 0.0
          %398 = vmatpush1.msra.mxu0 0.0
          %399 = vmatprep.subr.mxu0 0.0
          %400 = vmatpush1.msra.mxu0 0.0
          %401 = vmatprep.subr.mxu0 0.0
          %402 = vmatpush1.msra.mxu0 0.0
          %403 = vmatprep.subr.mxu0 0.0
          %404 = vmatpush1.msra.mxu0 0.0
          %405 = vmatprep.subr.mxu0 0.0
          %406 = vmatpush1.msra.mxu0 0.0
          %407 = vmatprep.subr.mxu0 0.0
          %408 = vmatpush1.msra.mxu0 0.0
          %409 = vmatprep.subr.mxu0 0.0
          %410 = vmatpush1.msra.mxu0 0.0
          %411 = vmatprep.mubr.f32.mxu0 0.0
          %412 = vmatmul.mubr.f32.gmra.mrb[0].mxu0 %v342
          %v413 = vpop.f32.mrb[0].mxu0
          %v414 = vadd.f32 0.0, %v413
          %v415 = vpop.f32.mrb[0].mxu0
          %v416 = vadd.f32 0.0, %v415
          %417 = vmatprep.mubr.f32.mxu0 0.0
          %418 = vmatmul.mubr.f32.gmra.mrb[0].mxu0 %v345
          %v419 = vpop.f32.mrb[0].mxu0
          %v420 = vadd.f32 0.0, %v419
          %v421 = vpop.f32.mrb[0].mxu0
          %v422 = vadd.f32 0.0, %v421
          %423 = vdwg.mxu0
          %424 = vmatprep.subr.mxu0 %v295
          %425 = vmatpush1.msra.mxu0 %v294
          %426 = vmatprep.subr.mxu0 %v301
          %427 = vmatpush1.msra.mxu0 %v300
          %428 = vmatprep.subr.mxu0 %v307
          %429 = vmatpush1.msra.mxu0 %v306
          %430 = vmatprep.subr.mxu0 %v313
          %431 = vmatpush1.msra.mxu0 %v312
          %432 = vmatprep.subr.mxu0 %v319
          %433 = vmatpush1.msra.mxu0 %v318
          %434 = vmatprep.subr.mxu0 %v325
          %435 = vmatpush1.msra.mxu0 %v324
          %436 = vmatprep.subr.mxu0 %v331
          %437 = vmatpush1.msra.mxu0 %v330
          %438 = vmatprep.subr.mxu0 %v337
          %439 = vmatpush1.msra.mxu0 %v336
          %440 = vmatprep.subr.mxu0 0.0
          %441 = vmatpush1.msra.mxu0 0.0
          %442 = vmatprep.subr.mxu0 0.0
          %443 = vmatpush1.msra.mxu0 0.0
          %444 = vmatprep.subr.mxu0 0.0
          %445 = vmatpush1.msra.mxu0 0.0
          %446 = vmatprep.subr.mxu0 0.0
          %447 = vmatpush1.msra.mxu0 0.0
          %448 = vmatprep.subr.mxu0 0.0
          %449 = vmatpush1.msra.mxu0 0.0
          %450 = vmatprep.subr.mxu0 0.0
          %451 = vmatpush1.msra.mxu0 0.0
          %452 = vmatprep.subr.mxu0 0.0
          %453 = vmatpush1.msra.mxu0 0.0
          %454 = vmatprep.subr.mxu0 0.0
          %455 = vmatpush1.msra.mxu0 0.0
          %456 = vmatprep.subr.mxu0 0.0
          %457 = vmatpush1.msra.mxu0 0.0
          %458 = vmatprep.subr.mxu0 0.0
          %459 = vmatpush1.msra.mxu0 0.0
          %460 = vmatprep.subr.mxu0 0.0
          %461 = vmatpush1.msra.mxu0 0.0
          %462 = vmatprep.subr.mxu0 0.0
          %463 = vmatpush1.msra.mxu0 0.0
          %464 = vmatprep.subr.mxu0 0.0
          %465 = vmatpush1.msra.mxu0 0.0
          %466 = vmatprep.subr.mxu0 0.0
          %467 = vmatpush1.msra.mxu0 0.0
          %468 = vmatprep.subr.mxu0 0.0
          %469 = vmatpush1.msra.mxu0 0.0
          %470 = vmatprep.subr.mxu0 0.0
          %471 = vmatpush1.msra.mxu0 0.0
          %472 = vmatprep.subr.mxu0 0.0
          %473 = vmatpush1.msra.mxu0 0.0
          %474 = vmatprep.subr.mxu0 0.0
          %475 = vmatpush1.msra.mxu0 0.0
          %476 = vmatprep.subr.mxu0 0.0
          %477 = vmatpush1.msra.mxu0 0.0
          %478 = vmatprep.subr.mxu0 0.0
          %479 = vmatpush1.msra.mxu0 0.0
          %480 = vmatprep.subr.mxu0 0.0
          %481 = vmatpush1.msra.mxu0 0.0
          %482 = vmatprep.subr.mxu0 0.0
          %483 = vmatpush1.msra.mxu0 0.0
          %484 = vmatprep.subr.mxu0 0.0
          %485 = vmatpush1.msra.mxu0 0.0
          %486 = vmatprep.subr.mxu0 0.0
          %487 = vmatpush1.msra.mxu0 0.0
          %488 = vmatprep.mubr.f32.mxu0 0.0
          %489 = vmatmul.mubr.f32.gmra.mrb[0].mxu0 %v342
          %v490 = vpop.f32.mrb[0].mxu0
          %v491 = vadd.f32 0.0, %v490
          %v492 = vpop.f32.mrb[0].mxu0
          %v493 = vadd.f32 0.0, %v492
          %494 = vmatprep.mubr.f32.mxu0 0.0
          %495 = vmatmul.mubr.f32.gmra.mrb[0].mxu0 %v345
          %v496 = vpop.f32.mrb[0].mxu0
          %v497 = vadd.f32 0.0, %v496
          %v498 = vpop.f32.mrb[0].mxu0
          %v499 = vadd.f32 0.0, %v498
          %500 = vdwg.mxu0
          %501 = vmatprep.subr.mxu0 %v297
          %502 = vmatpush1.msra.mxu0 %v296
          %503 = vmatprep.subr.mxu0 %v303
          %504 = vmatpush1.msra.mxu0 %v302
          %505 = vmatprep.subr.mxu0 %v309
          %506 = vmatpush1.msra.mxu0 %v308
          %507 = vmatprep.subr.mxu0 %v315
          %508 = vmatpush1.msra.mxu0 %v314
          %509 = vmatprep.subr.mxu0 %v321
          %510 = vmatpush1.msra.mxu0 %v320
          %511 = vmatprep.subr.mxu0 %v327
          %512 = vmatpush1.msra.mxu0 %v326
          %513 = vmatprep.subr.mxu0 %v333
          %514 = vmatpush1.msra.mxu0 %v332
          %515 = vmatprep.subr.mxu0 %v339
          %516 = vmatpush1.msra.mxu0 %v338
          %517 = vmatprep.subr.mxu0 0.0
          %518 = vmatpush1.msra.mxu0 0.0
          %519 = vmatprep.subr.mxu0 0.0
          %520 = vmatpush1.msra.mxu0 0.0
          %521 = vmatprep.subr.mxu0 0.0
          %522 = vmatpush1.msra.mxu0 0.0
          %523 = vmatprep.subr.mxu0 0.0
          %524 = vmatpush1.msra.mxu0 0.0
          %525 = vmatprep.subr.mxu0 0.0
          %526 = vmatpush1.msra.mxu0 0.0
          %527 = vmatprep.subr.mxu0 0.0
          %528 = vmatpush1.msra.mxu0 0.0
          %529 = vmatprep.subr.mxu0 0.0
          %530 = vmatpush1.msra.mxu0 0.0
          %531 = vmatprep.subr.mxu0 0.0
          %532 = vmatpush1.msra.mxu0 0.0
          %533 = vmatprep.subr.mxu0 0.0
          %534 = vmatpush1.msra.mxu0 0.0
          %535 = vmatprep.subr.mxu0 0.0
          %536 = vmatpush1.msra.mxu0 0.0
          %537 = vmatprep.subr.mxu0 0.0
          %538 = vmatpush1.msra.mxu0 0.0
          %539 = vmatprep.subr.mxu0 0.0
          %540 = vmatpush1.msra.mxu0 0.0
          %541 = vmatprep.subr.mxu0 0.0
          %542 = vmatpush1.msra.mxu0 0.0
          %543 = vmatprep.subr.mxu0 0.0
          %544 = vmatpush1.msra.mxu0 0.0
          %545 = vmatprep.subr.mxu0 0.0
          %546 = vmatpush1.msra.mxu0 0.0
          %547 = vmatprep.subr.mxu0 0.0
          %548 = vmatpush1.msra.mxu0 0.0
          %549 = vmatprep.subr.mxu0 0.0
          %550 = vmatpush1.msra.mxu0 0.0
          %551 = vmatprep.subr.mxu0 0.0
          %552 = vmatpush1.msra.mxu0 0.0
          %553 = vmatprep.subr.mxu0 0.0
          %554 = vmatpush1.msra.mxu0 0.0
          %555 = vmatprep.subr.mxu0 0.0
          %556 = vmatpush1.msra.mxu0 0.0
          %557 = vmatprep.subr.mxu0 0.0
          %558 = vmatpush1.msra.mxu0 0.0
          %559 = vmatprep.subr.mxu0 0.0
          %560 = vmatpush1.msra.mxu0 0.0
          %561 = vmatprep.subr.mxu0 0.0
          %562 = vmatpush1.msra.mxu0 0.0
          %563 = vmatprep.subr.mxu0 0.0
          %564 = vmatpush1.msra.mxu0 0.0
          %565 = vmatprep.mubr.f32.mxu0 0.0
          %566 = vmatmul.mubr.f32.gmra.mrb[0].mxu0 %v342
          %v567 = vpop.f32.mrb[0].mxu0
          %v568 = vadd.f32 0.0, %v567
          %v569 = vpop.f32.mrb[0].mxu0
          %v570 = vadd.f32 0.0, %v569
          %571 = vmatprep.mubr.f32.mxu0 0.0
          %572 = vmatmul.mubr.f32.gmra.mrb[0].mxu0 %v345
          %v573 = vpop.f32.mrb[0].mxu0
          %v574 = vadd.f32 0.0, %v573
          %v575 = vpop.f32.mrb[0].mxu0
          %v576 = vadd.f32 0.0, %v575
          %577 = vdwg.mxu0
          %578 = vst [vmem:[#allocation2] sm:$0xff] %v414
          %579 = vst [vmem:[#allocation2 + $0x8] sm:$0xff] %v416
          %580 = vst [vmem:[#allocation2 + $0x10] sm:$0xff] %v420
          %581 = vst [vmem:[#allocation2 + $0x18] sm:$0xff] %v422
          %582 = vst [vmem:[#allocation2 + $0x20] sm:$0xff] %v491
          %583 = vst [vmem:[#allocation2 + $0x28] sm:$0xff] %v493
          %584 = vst [vmem:[#allocation2 + $0x30] sm:$0xff] %v497
          %585 = vst [vmem:[#allocation2 + $0x38] sm:$0xff] %v499
          %586 = vst [vmem:[#allocation2 + $0x40] sm:$0xff] %v568
          %587 = vst [vmem:[#allocation2 + $0x48] sm:$0xff] %v570
          %588 = vst [vmem:[#allocation2 + $0x50] sm:$0xff] %v574
          %589 = vst [vmem:[#allocation2 + $0x58] sm:$0xff] %v576
        $region52: #{tpu_custom_call.1} parent=35 // pred_fallthru
          _
        %v590 = vld [vmem:[%s250] sm:$0xff]
        %v591 = vld [vmem:[%s250 + $0x8] sm:$0xff]
        %v592 = vld [vmem:[#allocation2] sm:$0xff]
        %v593 = vld [vmem:[#allocation2 + $0x8] sm:$0xff]
        %v594 = vld [vmem:[#allocation2 + $0x10] sm:$0xff]
        %v595 = vld [vmem:[#allocation2 + $0x18] sm:$0xff]
        %v596 = vld [vmem:[#allocation2 + $0x20] sm:$0xff]
        %v597 = vld [vmem:[#allocation2 + $0x28] sm:$0xff]
        %v598 = vld [vmem:[#allocation2 + $0x30] sm:$0xff]
        %v599 = vld [vmem:[#allocation2 + $0x38] sm:$0xff]
        %v600 = vld [vmem:[#allocation2 + $0x40] sm:$0xff]
        %v601 = vld [vmem:[#allocation2 + $0x48] sm:$0xff]
        %v602 = vld [vmem:[#allocation2 + $0x50] sm:$0xff]
        %v603 = vld [vmem:[#allocation2 + $0x58] sm:$0xff]
        %v604 = vld [vmem:[%s3] sm:$0x3]
        %v606 = vlaneseq
        %v607 = vshrl.u32 %v606, 7
        %v608 = vsub.s32 0, %v607
        %v609 = vrot.slane %v604, %v608
        %v610 = vlaneseq
        %v611 = vshrl.u32 %v610, 7
        %v612 = vsub.s32 1, %v611
        %v613 = vrot.slane %v604, %v612
        %vm616 = vcmask 392192
        %v618 = vsel %vm616, %v590, 0
        %v621 = vsel %vm616, %v591, 0
        %623 = vmatprep.subr.mxu0 %v593
        %624 = vmatpush1.msra.mxu0 %v592
        %625 = vmatprep.subr.mxu0 %v595
        %626 = vmatpush1.msra.mxu0 %v594
        %627 = vmatprep.subr.mxu0 %v597
        %628 = vmatpush1.msra.mxu0 %v596
        %629 = vmatprep.subr.mxu0 %v599
        %630 = vmatpush1.msra.mxu0 %v598
        %631 = vmatprep.subr.mxu0 %v601
        %632 = vmatpush1.msra.mxu0 %v600
        %633 = vmatprep.subr.mxu0 %v603
        %634 = vmatpush1.msra.mxu0 %v602
        %635 = vmatprep.subr.mxu0 0.0
        %636 = vmatpush1.msra.mxu0 0.0
        %637 = vmatprep.subr.mxu0 0.0
        %638 = vmatpush1.msra.mxu0 0.0
        %639 = vmatprep.subr.mxu0 0.0
        %640 = vmatpush1.msra.mxu0 0.0
        %641 = vmatprep.subr.mxu0 0.0
        %642 = vmatpush1.msra.mxu0 0.0
        %643 = vmatprep.subr.mxu0 0.0
        %644 = vmatpush1.msra.mxu0 0.0
        %645 = vmatprep.subr.mxu0 0.0
        %646 = vmatpush1.msra.mxu0 0.0
        %647 = vmatprep.subr.mxu0 0.0
        %648 = vmatpush1.msra.mxu0 0.0
        %649 = vmatprep.subr.mxu0 0.0
        %650 = vmatpush1.msra.mxu0 0.0
        %651 = vmatprep.subr.mxu0 0.0
        %652 = vmatpush1.msra.mxu0 0.0
        %653 = vmatprep.subr.mxu0 0.0
        %654 = vmatpush1.msra.mxu0 0.0
        %655 = vmatprep.subr.mxu0 0.0
        %656 = vmatpush1.msra.mxu0 0.0
        %657 = vmatprep.subr.mxu0 0.0
        %658 = vmatpush1.msra.mxu0 0.0
        %659 = vmatprep.subr.mxu0 0.0
        %660 = vmatpush1.msra.mxu0 0.0
        %661 = vmatprep.subr.mxu0 0.0
        %662 = vmatpush1.msra.mxu0 0.0
        %663 = vmatprep.subr.mxu0 0.0
        %664 = vmatpush1.msra.mxu0 0.0
        %665 = vmatprep.subr.mxu0 0.0
        %666 = vmatpush1.msra.mxu0 0.0
        %667 = vmatprep.subr.mxu0 0.0
        %668 = vmatpush1.msra.mxu0 0.0
        %669 = vmatprep.subr.mxu0 0.0
        %670 = vmatpush1.msra.mxu0 0.0
        %671 = vmatprep.subr.mxu0 0.0
        %672 = vmatpush1.msra.mxu0 0.0
        %673 = vmatprep.subr.mxu0 0.0
        %674 = vmatpush1.msra.mxu0 0.0
        %675 = vmatprep.subr.mxu0 0.0
        %676 = vmatpush1.msra.mxu0 0.0
        %677 = vmatprep.subr.mxu0 0.0
        %678 = vmatpush1.msra.mxu0 0.0
        %679 = vmatprep.subr.mxu0 0.0
        %680 = vmatpush1.msra.mxu0 0.0
        %681 = vmatprep.subr.mxu0 0.0
        %682 = vmatpush1.msra.mxu0 0.0
        %683 = vmatprep.subr.mxu0 0.0
        %684 = vmatpush1.msra.mxu0 0.0
        %685 = vmatprep.subr.mxu0 0.0
        %686 = vmatpush1.msra.mxu0 0.0
        %687 = vmatprep.mubr.f32.mxu0 0.0
        %688 = vmatmul.mubr.f32.gmra.mrb[0].mxu0 %v618
        %v689 = vpop.f32.mrb[0].mxu0
        %v690 = vadd.f32 %v609, %v689
        %v691 = vpop.f32.mrb[0].mxu0
        %v692 = vadd.f32 %v613, %v691
        %693 = vmatprep.mubr.f32.mxu0 0.0
        %694 = vmatmul.mubr.f32.gmra.mrb[0].mxu0 %v621
        %v695 = vpop.f32.mrb[0].mxu0
        %v696 = vadd.f32 %v609, %v695
        %v697 = vpop.f32.mrb[0].mxu0
        %v698 = vadd.f32 %v613, %v697
        %699 = vdwg.mxu0
        %v700 = vmax.f32 %v690, 0.0
        %v701 = vmax.f32 %v692, 0.0
        %v702 = vmax.f32 %v696, 0.0
        %v703 = vmax.f32 %v698, 0.0
        %704 = vst [vmem:[%s283] sm:$0xff] %v700
        %705 = vst [vmem:[%s283 + $0x8] sm:$0xff] %v701
        %706 = vst [vmem:[%s283 + $0x10] sm:$0xff] %v702
        %707 = vst [vmem:[%s283 + $0x18] sm:$0xff] %v703
        %s708 = sand.u32 %s140, 1
        %s709 = scalar_lea.sflag [#allocation5], %s708
        %s710 = sand.u32 %s140, 1
        %s711 = smul.addr %s710, 32
        %s712 = scalar_lea.vmem [#allocation9], %s711
        // Predicated region
        $region53: #{tpu_custom_call.1} parent=35 // pred_check
          %p713 = pneg %p150
        $region54: #{tpu_custom_call.1} parent=35 // pred_check_branch
          %715 = sbr.rel (%p713) target = $region56
        $region55: #{tpu_custom_call.1} parent=35 // pred_region
          %s716 = smul.u32 2, %s29
          %s718 = ssub.s32 512, 512
          %719 = vsyncadd %s709, %s718
          %s720 = smul.addr %s716, 2
          %s721 = smul.addr %s28, 8
          %s722 = sadd.s32 %s720, %s721
          %s723 = smul.addr %s722, 128
          %s724 = scalar_lea.hbm %s4, %s723
          %s725 = sshll.u32 %s712, 4
          %s726 = int_to_ptr.vmem [resolvable:$true] %s725
          %731 = dma.vmem_to_hbm [thread:$0]  %s726, 512, %s724, %s709, 256, 256, 16
        $region56: #{tpu_custom_call.1} parent=35 // pred_fallthru
          _
      $region36: #{tpu_custom_call.1} parent=5 // pred_fallthru
        _
      %p732 = scmp.le.s32.totalorder 2, %s19
      // Predicated region
      $region57: #{tpu_custom_call.1} parent=5 // pred_check
        %p733 = pneg %p732
      $region58: #{tpu_custom_call.1} parent=5 // pred_check_branch
        %735 = sbr.rel (%p733) target = $region60
      $region59: #{tpu_custom_call.1} parent=5 // pred_region
        %s736 = ssub.s32 %s19, 2
        // Predicated region
        $region61: #{tpu_custom_call.1} parent=59 // pred_check
          %p737 = pneg %p156
        $region62: #{tpu_custom_call.1} parent=59 // pred_check_branch
          %739 = sbr.rel (%p737) target = $region64
        $region63: #{tpu_custom_call.1} parent=59 // pred_region
          %s740 = sand.u32 %s141, 1
          %s741 = scalar_lea.sflag [#allocation5], %s740
          %s742 = sand.u32 %s141, 1
          %s743 = smul.addr %s742, 32
          %s744 = scalar_lea.vmem [#allocation9], %s743
          %745 = dma.done %s741, 512
        $region64: #{tpu_custom_call.1} parent=59 // pred_fallthru
          _
      $region60: #{tpu_custom_call.1} parent=5 // pred_fallthru
        _
    $region6: #{tpu_custom_call.1} parent=1 // loop_footer
      %s23 = sadd.s32 1, %s19
    $region7: #{tpu_custom_call.1} parent=1 // loop_footer_branch
      %18 = sbr.rel target = $region3
    $region8: #{tpu_custom_call.1} parent=1 // loop_exit
      _
    %746 = vsyncpa [#allocation4], 1
    %s747 = scalar_lea.sflag [#allocation4], 1
    %748 = vsyncpa %s747, 1
    %749 = vsyncpa [#allocation7], 1
    %s750 = scalar_lea.sflag [#allocation7], 1
    %751 = vsyncpa %s750, 1
    %752 = vsyncpa [#allocation5], 1
    %s753 = scalar_lea.sflag [#allocation5], 1
    %754 = vsyncpa %s753, 1

// kernel: tpu_custom_call.1
$region0: #{tpu_custom_call.1}
  #allocation0 [shape = 'u32[]', space=smem, size = 0x4, offset = 0x4, fixed_abs, tag = 'smem constant byte address 0x4 - core index']
  #allocation1 [shape = 'u32[144,128]{1,0:T(1,128)}', space=vmem, size = 0x12000, scoped, tag = 'internal scratch']
  #allocation2 [shape = 'f32[48,256]{1,0:T(8,128)}', space=vmem, size = 0xc000, scoped, tag = 'scratch operand']
  %s0 = inlined_call_operand.hbm [shape: f32[2,16,64], index: 0, kind: input, shape index: {}]
  %s1 = inlined_call_operand.hbm [shape: f32[32,48], index: 1, kind: input, shape index: {}]
  %s2 = inlined_call_operand.hbm [shape: f32[64,768], index: 2, kind: input, shape index: {}]
  %s3 = inlined_call_operand.vmem [shape: f32[1,256], index: 3, kind: input, shape index: {}]
  %s4 = inlined_call_operand.hbm [shape: f32[2,32,256], index: 4, kind: output, shape index: {}]
  %s5 = sld [smem:[#allocation0]]
  $region65: #{tpu_custom_call.1} parent=0
    _
  %s7 = ssub.s32 1, %s5
  %s8 = scalar_select 0, %s7, %s5
  $region1: #{tpu_custom_call.1} parent=0
    #allocation3 [shape = 'u8[16384]{0}', space=vmem, size = 0x4000, scoped, tag = 'input window, operand 0']
    #allocation4 [shape = 's32[2]{0}', space=sflag, size = 0x8, scoped, tag = 'scoped memory for tpu_custom_call.1']
    #allocation5 [shape = 's32[2]{0}', space=sflag, size = 0x8, scoped, tag = 'scoped memory for tpu_custom_call.1']
    #allocation6 [shape = 'u8[16384]{0}', space=vmem, size = 0x4000, scoped, tag = 'input window, operand 1']
    #allocation7 [shape = 's32[2]{0}', space=sflag, size = 0x8, scoped, tag = 'scoped memory for tpu_custom_call.1']
    #allocation8 [shape = 'u8[196608]{0}', space=vmem, size = 0x30000, scoped, tag = 'input window, operand 2, single buffered']
    #allocation9 [shape = 'u8[32768]{0}', space=vmem, size = 0x8000, scoped, tag = 'output window, operand 0']
    %9 = vsyncpa [#allocation4], 0
    %s10 = scalar_lea.sflag [#allocation4], 1
    %11 = vsyncpa %s10, 0
    %12 = vsyncpa [#allocation7], 0
    %s13 = scalar_lea.sflag [#allocation7], 1
    %14 = vsyncpa %s13, 0
    %15 = vsyncpa [#allocation5], 0
    %s16 = scalar_lea.sflag [#allocation5], 1
    %17 = vsyncpa %s16, 0
    loop: start=0, step=1, limit=6
    $region2: #{tpu_custom_call.1} parent=1 // loop_pre_header
      _
    $region3: #{tpu_custom_call.1} parent=1 // loop_header
      %s19 = sphi 0, %s23
      %p20 = scmp.ge.s32.totalorder %s19, 6
      %s26 = sphi 0, %s38
      %s27 = sphi 0, %s34
      %s28 = sphi 0, %s26
      %s29 = sphi 0, %s27
      %s30 = sphi 0, %s28
      %s31 = sphi 0, %s29
      %s41 = sphi 0, %s43
      %s44 = sphi 0, %s41
      %s45 = sphi 0, %s44
      %s61 = sphi 0, %s45
      %s67 = sphi 0, %s69
      %s70 = sphi 0, %s67
      %s71 = sphi 0, %s70
      %s87 = sphi 0, %s71
      %s91 = sphi 0, %s91
      %s93 = sphi 0, %s91
      %s94 = sphi 0, %s93
      %s108 = sphi 0, %s94
      %s112 = sphi 0, %s112
      %s114 = sphi 0, %s112
      %s115 = sphi 0, %s114
      %s129 = sphi 0, %s115
      %s137 = sphi 0, %s139
      %s140 = sphi 0, %s137
      %s141 = sphi 0, %s140
      %s157 = sphi 0, %s141
    $region4: #{tpu_custom_call.1} parent=1 // loop_header_branch
      %22 = sbr.rel (%p20) target = $region8
    $region5: #{tpu_custom_call.1} parent=1 // loop_body
      %s24 = ssub.s32 %s19, 1
      %s25 = ssub.s32 %s19, 2
      %s32 = sadd.s32 1, %s27
      %p33 = scmp.ge.s32.totalorder %s32, 2
      %s34 = scalar_select %p33, 0, %s32
      %s35 = sadd.s32 1, %s26
      %s36 = scalar_select %p33, %s35, %s26
      %p37 = scmp.ge.s32.totalorder %s36, 2
      %s38 = scalar_select %p37, 0, %s36
      %s39 = ssub.s32 %s26, %s38
      %p40 = scmp.eq.s32.totalorder %s39, 0
      %s42 = sadd.s32 %s41, 1
      %s43 = scalar_select %p40, %s41, %s42
      %p46 = pneg %p40
      %p47 = scmp.eq.s32.totalorder %s19, 3
      %p48 = por %p46, %p47
      %p49 = scmp.ne.s32.totalorder %s41, %s44
      %p50 = scmp.eq.s32.totalorder %s19, 0
      %p51 = por %p49, %p50
      %p52 = scmp.ne.s32.totalorder %s41, %s44
      %p53 = scmp.eq.s32.totalorder %s24, 3
      %p54 = por %p52, %p53
      %p55 = scmp.ne.s32.totalorder %s44, %s45
      %p56 = scmp.eq.s32.totalorder %s24, 0
      %p57 = por %p55, %p56
      %p58 = scmp.ne.s32.totalorder %s44, %s45
      %p59 = scmp.eq.s32.totalorder %s25, 3
      %p60 = por %p58, %p59
      %p62 = scmp.ne.s32.totalorder %s45, %s61
      %p63 = scmp.eq.s32.totalorder %s25, 0
      %p64 = por %p62, %p63
      %s65 = ssub.s32 %s27, %s34
      %p66 = scmp.eq.s32.totalorder %s65, 0
      %s68 = sadd.s32 %s67, 1
      %s69 = scalar_select %p66, %s67, %s68
      %p72 = pneg %p66
      %p73 = scmp.eq.s32.totalorder %s19, 3
      %p74 = por %p72, %p73
      %p75 = scmp.ne.s32.totalorder %s67, %s70
      %p76 = scmp.eq.s32.totalorder %s19, 0
      %p77 = por %p75, %p76
      %p78 = scmp.ne.s32.totalorder %s67, %s70
      %p79 = scmp.eq.s32.totalorder %s24, 3
      %p80 = por %p78, %p79
      %p81 = scmp.ne.s32.totalorder %s70, %s71
      %p82 = scmp.eq.s32.totalorder %s24, 0
      %p83 = por %p81, %p82
      %p84 = scmp.ne.s32.totalorder %s70, %s71
      %p85 = scmp.eq.s32.totalorder %s25, 3
      %p86 = por %p84, %p85
      %p88 = scmp.ne.s32.totalorder %s71, %s87
      %p89 = scmp.eq.s32.totalorder %s25, 0
      %p90 = por %p88, %p89
      %s92 = sadd.s32 %s91, 1
      %p95 = scmp.eq.s32.totalorder %s19, 3
      %p96 = scmp.ne.s32.totalorder %s91, %s93
      %p97 = scmp.eq.s32.totalorder %s19, 0
      %p98 = por %p96, %p97
      %p99 = scmp.ne.s32.totalorder %s91, %s93
      %p100 = scmp.eq.s32.totalorder %s24, 3
      %p101 = por %p99, %p100
      %p102 = scmp.ne.s32.totalorder %s93, %s94
      %p103 = scmp.eq.s32.totalorder %s24, 0
      %p104 = por %p102, %p103
      %p105 = scmp.ne.s32.totalorder %s93, %s94
      %p106 = scmp.eq.s32.totalorder %s25, 3
      %p107 = por %p105, %p106
      %p109 = scmp.ne.s32.totalorder %s94, %s108
      %p110 = scmp.eq.s32.totalorder %s25, 0
      %p111 = por %p109, %p110
      %s113 = sadd.s32 %s112, 1
      %p116 = scmp.eq.s32.totalorder %s19, 3
      %p117 = scmp.ne.s32.totalorder %s112, %s114
      %p118 = scmp.eq.s32.totalorder %s19, 0
      %p119 = por %p117, %p118
      %p120 = scmp.ne.s32.totalorder %s112, %s114
      %p121 = scmp.eq.s32.totalorder %s24, 3
      %p122 = por %p120, %p121
      %p123 = scmp.ne.s32.totalorder %s114, %s115
      %p124 = scmp.eq.s32.totalorder %s24, 0
      %p125 = por %p123, %p124
      %p126 = scmp.ne.s32.totalorder %s114, %s115
      %p127 = scmp.eq.s32.totalorder %s25, 3
      %p128 = por %p126, %p127
      %p130 = scmp.ne.s32.totalorder %s115, %s129
      %p131 = scmp.eq.s32.totalorder %s25, 0
      %p132 = por %p130, %p131
      %s133 = ssub.s32 %s26, %s38
      %s134 = ssub.s32 %s27, %s34
      %s135 = sor.u32 %s133, %s134
      %p136 = scmp.eq.s32.totalorder %s135, 0
      %s138 = sadd.s32 %s137, 1
      %s139 = scalar_select %p136, %s137, %s138
      %p142 = pneg %p136
      %p143 = scmp.eq.s32.totalorder %s19, 3
      %p144 = por %p142, %p143
      %p145 = scmp.ne.s32.totalorder %s137, %s140
      %p146 = scmp.eq.s32.totalorder %s19, 0
      %p147 = por %p145, %p146
      %p148 = scmp.ne.s32.totalorder %s137, %s140
      %p149 = scmp.eq.s32.totalorder %s24, 3
      %p150 = por %p148, %p149
      %p151 = scmp.ne.s32.totalorder %s140, %s141
      %p152 = scmp.eq.s32.totalorder %s24, 0
      %p153 = por %p151, %p152
      %p154 = scmp.ne.s32.totalorder %s140, %s141
      %p155 = scmp.eq.s32.totalorder %s25, 3
      %p156 = por %p154, %p155
      %p158 = scmp.ne.s32.totalorder %s141, %s157
      %p159 = scmp.eq.s32.totalorder %s25, 0
      %p160 = por %p158, %p159
      %p161 = scmp.le.s32.totalorder 1, %s19
      %p162 = scmp.lt.s32.totalorder %s19, 5
      %p163 = pnand %p161, %p162
      %p164 = pneg %p163
      // Predicated region
      $region9: #{tpu_custom_call.1} parent=5 // pred_check
        _
      $region10: #{tpu_custom_call.1} parent=5 // pred_check_branch
        %166 = sbr.rel (%p163) target = $region12
      $region11: #{tpu_custom_call.1} parent=5 // pred_region
        %s167 = ssub.s32 %s19, 1
        // Predicated region
        $region13: #{tpu_custom_call.1} parent=11 // pred_check
          %p168 = pneg %p104
        $region14: #{tpu_custom_call.1} parent=11 // pred_check_branch
          %170 = sbr.rel (%p168) target = $region16
        $region15: #{tpu_custom_call.1} parent=11 // pred_region
          %s172 = ssub.s32 6144, 6144
          %173 = vsyncadd [#allocation7], %s172
          %s174 = sshll.u32 [#allocation8], 4
          %s175 = int_to_ptr.vmem [resolvable:$true] %s174
          %180 = dma.hbm_to_vmem [thread:$0]  %s2, 6144, %s175, [#allocation7], 768, 768, 48
        $region16: #{tpu_custom_call.1} parent=11 // pred_fallthru
          _
        // Predicated region
        $region17: #{tpu_custom_call.1} parent=11 // pred_check
          %p181 = pneg %p125
        $region18: #{tpu_custom_call.1} parent=11 // pred_check_branch
          %183 = sbr.rel (%p181) target = $region20
        $region19: #{tpu_custom_call.1} parent=11 // pred_region
          _
        $region20: #{tpu_custom_call.1} parent=11 // pred_fallthru
          _
      $region12: #{tpu_custom_call.1} parent=5 // pred_fallthru
        _
      %p184 = scmp.lt.s32.totalorder %s19, 4
      // Predicated region
      $region21: #{tpu_custom_call.1} parent=5 // pred_check
        %p185 = pneg %p184
      $region22: #{tpu_custom_call.1} parent=5 // pred_check_branch
        %187 = sbr.rel (%p185) target = $region24
      $region23: #{tpu_custom_call.1} parent=5 // pred_region
        // Predicated region
        $region25: #{tpu_custom_call.1} parent=23 // pred_check
          %p188 = pneg %p51
        $region26: #{tpu_custom_call.1} parent=23 // pred_check_branch
          %190 = sbr.rel (%p188) target = $region28
        $region27: #{tpu_custom_call.1} parent=23 // pred_region
          %s191 = sand.u32 %s41, 1
          %s192 = scalar_lea.sflag [#allocation4], %s191
          %s193 = sand.u32 %s41, 1
          %s194 = smul.addr %s193, 16
          %s195 = scalar_lea.vmem [#allocation3], %s194
          %s197 = ssub.s32 256, 256
          %198 = vsyncadd %s192, %s197
          %s199 = smul.addr %s26, 2
          %s200 = smul.addr %s199, 128
          %s201 = scalar_lea.hbm %s0, %s200
          %s202 = sshll.u32 %s195, 4
          %s203 = int_to_ptr.vmem [resolvable:$true] %s202
          %208 = dma.hbm_to_vmem [thread:$0]  %s201, 256, %s203, %s192, 128, 128, 8
        $region28: #{tpu_custom_call.1} parent=23 // pred_fallthru
          _
        // Predicated region
        $region29: #{tpu_custom_call.1} parent=23 // pred_check
          %p209 = pneg %p77
        $region30: #{tpu_custom_call.1} parent=23 // pred_check_branch
          %211 = sbr.rel (%p209) target = $region32
        $region31: #{tpu_custom_call.1} parent=23 // pred_region
          %s212 = sand.u32 %s19, 1
          %s213 = scalar_lea.sflag [#allocation7], %s212
          %s214 = sand.u32 %s67, 1
          %s215 = smul.addr %s214, 16
          %s216 = scalar_lea.vmem [#allocation6], %s215
          %s217 = smul.u32 2, %s27
          %s219 = ssub.s32 256, 256
          %220 = vsyncadd %s213, %s219
          %s221 = smul.addr %s217, 128
          %s222 = scalar_lea.hbm %s1, %s221
          %s223 = sshll.u32 %s216, 4
          %s224 = int_to_ptr.vmem [resolvable:$true] %s223
          %229 = dma.hbm_to_vmem [thread:$0]  %s222, 256, %s224, %s213, 128, 128, 8
        $region32: #{tpu_custom_call.1} parent=23 // pred_fallthru
          _
      $region24: #{tpu_custom_call.1} parent=5 // pred_fallthru
        _
      %p230 = scmp.le.s32.totalorder 1, %s19
      %p231 = scmp.lt.s32.totalorder %s19, 5
      %p232 = pnand %p230, %p231
      %p233 = pneg %p232
      // Predicated region
      $region33: #{tpu_custom_call.1} parent=5 // pred_check
        _
      $region34: #{tpu_custom_call.1} parent=5 // pred_check_branch
        %235 = sbr.rel (%p232) target = $region36
      $region35: #{tpu_custom_call.1} parent=5 // pred_region
        %s236 = ssub.s32 %s19, 1
        %s237 = sand.u32 %s44, 1
        %s238 = scalar_lea.sflag [#allocation4], %s237
        %s239 = sand.u32 %s44, 1
        %s240 = smul.addr %s239, 16
        %s241 = scalar_lea.vmem [#allocation3], %s240
        // Predicated region
        $region37: #{tpu_custom_call.1} parent=35 // pred_check
          %p242 = pneg %p57
        $region38: #{tpu_custom_call.1} parent=35 // pred_check_branch
          %244 = sbr.rel (%p242) target = $region40
        $region39: #{tpu_custom_call.1} parent=35 // pred_region
          %245 = dma.done %s238, 256
        $region40: #{tpu_custom_call.1} parent=35 // pred_fallthru
          _
        %s246 = sand.u32 %s24, 1
        %s247 = scalar_lea.sflag [#allocation7], %s246
        %s248 = sand.u32 %s70, 1
        %s249 = smul.addr %s248, 16
        %s250 = scalar_lea.vmem [#allocation6], %s249
        // Predicated region
        $region41: #{tpu_custom_call.1} parent=35 // pred_check
          %p251 = pneg %p83
        $region42: #{tpu_custom_call.1} parent=35 // pred_check_branch
          %253 = sbr.rel (%p251) target = $region44
        $region43: #{tpu_custom_call.1} parent=35 // pred_region
          %254 = dma.done %s247, 256
        $region44: #{tpu_custom_call.1} parent=35 // pred_fallthru
          _
        // Predicated region
        $region45: #{tpu_custom_call.1} parent=35 // pred_check
          %p255 = pneg %p104
        $region46: #{tpu_custom_call.1} parent=35 // pred_check_branch
          %257 = sbr.rel (%p255) target = $region48
        $region47: #{tpu_custom_call.1} parent=35 // pred_region
          %258 = dma.done [#allocation7], 6144
        $region48: #{tpu_custom_call.1} parent=35 // pred_fallthru
          _
        %s259 = sand.u32 %s44, 1
        %s260 = scalar_lea.sflag [#allocation4], %s259
        %s261 = sand.u32 %s44, 1
        %s262 = smul.addr %s261, 16
        %s263 = scalar_lea.vmem [#allocation3], %s262
        %p264 = pneg %p57
        %p265 = pneg %p54
        %s266 = sand.u32 %s24, 1
        %s267 = scalar_lea.sflag [#allocation7], %s266
        %s268 = sand.u32 %s70, 1
        %s269 = smul.addr %s268, 16
        %s270 = scalar_lea.vmem [#allocation6], %s269
        %p271 = pneg %p83
        %p272 = pneg %p80
        %p273 = pneg %p104
        %p274 = pneg %p101
        %p275 = pneg %p125
        %p276 = pneg %p122
        %p277 = pneg %p153
        %p278 = pneg %p150
        %s279 = sand.u32 %s140, 1
        %s280 = scalar_lea.sflag [#allocation5], %s279
        %s281 = sand.u32 %s140, 1
        %s282 = smul.addr %s281, 32
        %s283 = scalar_lea.vmem [#allocation9], %s282
        %s284 = smul.u32 2, %s29
        %s285 = smul.u32 2, %s29
        %p286 = scmp.eq.s32.totalorder %s29, 0
        // Predicated region
        $region49: #{tpu_custom_call.1} parent=35 // pred_check
          %p287 = pneg %p286
        $region50: #{tpu_custom_call.1} parent=35 // pred_check_branch
          %289 = sbr.rel (%p287) target = $region52
        $region51: #{tpu_custom_call.1} parent=35 // pred_region
          %v290 = vld [vmem:[%s241] sm:$0xff]
          %v291 = vld [vmem:[%s241 + $0x8] sm:$0xff]
          %v292 = vld [vmem:[#allocation8] sm:$0xff]
          %v293 = vld [vmem:[#allocation8 + $0x8] sm:$0xff]
          %v294 = vld [vmem:[#allocation8 + $0x10] sm:$0xff]
          %v295 = vld [vmem:[#allocation8 + $0x18] sm:$0xff]
          %v296 = vld [vmem:[#allocation8 + $0x20] sm:$0xff]
          %v297 = vld [vmem:[#allocation8 + $0x28] sm:$0xff]
          %v298 = vld [vmem:[#allocation8 + $0x30] sm:$0xff]
          %v299 = vld [vmem:[#allocation8 + $0x38] sm:$0xff]
          %v300 = vld [vmem:[#allocation8 + $0x40] sm:$0xff]
          %v301 = vld [vmem:[#allocation8 + $0x48] sm:$0xff]
          %v302 = vld [vmem:[#allocation8 + $0x50] sm:$0xff]
          %v303 = vld [vmem:[#allocation8 + $0x58] sm:$0xff]
          %v304 = vld [vmem:[#allocation8 + $0x60] sm:$0xff]
          %v305 = vld [vmem:[#allocation8 + $0x68] sm:$0xff]
          %v306 = vld [vmem:[#allocation8 + $0x70] sm:$0xff]
          %v307 = vld [vmem:[#allocation8 + $0x78] sm:$0xff]
          %v308 = vld [vmem:[#allocation8 + $0x80] sm:$0xff]
          %v309 = vld [vmem:[#allocation8 + $0x88] sm:$0xff]
          %v310 = vld [vmem:[#allocation8 + $0x90] sm:$0xff]
          %v311 = vld [vmem:[#allocation8 + $0x98] sm:$0xff]
          %v312 = vld [vmem:[#allocation8 + $0xa0] sm:$0xff]
          %v313 = vld [vmem:[#allocation8 + $0xa8] sm:$0xff]
          %v314 = vld [vmem:[#allocation8 + $0xb0] sm:$0xff]
          %v315 = vld [vmem:[#allocation8 + $0xb8] sm:$0xff]
          %v316 = vld [vmem:[#allocation8 + $0xc0] sm:$0xff]
          %v317 = vld [vmem:[#allocation8 + $0xc8] sm:$0xff]
          %v318 = vld [vmem:[#allocation8 + $0xd0] sm:$0xff]
          %v319 = vld [vmem:[#allocation8 + $0xd8] sm:$0xff]
          %v320 = vld [vmem:[#allocation8 + $0xe0] sm:$0xff]
          %v321 = vld [vmem:[#allocation8 + $0xe8] sm:$0xff]
          %v322 = vld [vmem:[#allocation8 + $0xf0] sm:$0xff]
          %v323 = vld [vmem:[#allocation8 + $0xf8] sm:$0xff]
          %v324 = vld [vmem:[#allocation8 + $0x100] sm:$0xff]
          %v325 = vld [vmem:[#allocation8 + $0x108] sm:$0xff]
          %v326 = vld [vmem:[#allocation8 + $0x110] sm:$0xff]
          %v327 = vld [vmem:[#allocation8 + $0x118] sm:$0xff]
          %v328 = vld [vmem:[#allocation8 + $0x120] sm:$0xff]
          %v329 = vld [vmem:[#allocation8 + $0x128] sm:$0xff]
          %v330 = vld [vmem:[#allocation8 + $0x130] sm:$0xff]
          %v331 = vld [vmem:[#allocation8 + $0x138] sm:$0xff]
          %v332 = vld [vmem:[#allocation8 + $0x140] sm:$0xff]
          %v333 = vld [vmem:[#allocation8 + $0x148] sm:$0xff]
          %v334 = vld [vmem:[#allocation8 + $0x150] sm:$0xff]
          %v335 = vld [vmem:[#allocation8 + $0x158] sm:$0xff]
          %v336 = vld [vmem:[#allocation8 + $0x160] sm:$0xff]
          %v337 = vld [vmem:[#allocation8 + $0x168] sm:$0xff]
          %v338 = vld [vmem:[#allocation8 + $0x170] sm:$0xff]
          %v339 = vld [vmem:[#allocation8 + $0x178] sm:$0xff]
          %vm340 = vcmask 523264
          %v342 = vsel %vm340, %v290, 0
          %v345 = vsel %vm340, %v291, 0
          %347 = vmatprep.subr.mxu0 %v293
          %348 = vmatpush1.msra.mxu0 %v292
          %349 = vmatprep.subr.mxu0 %v299
          %350 = vmatpush1.msra.mxu0 %v298
          %351 = vmatprep.subr.mxu0 %v305
          %352 = vmatpush1.msra.mxu0 %v304
          %353 = vmatprep.subr.mxu0 %v311
          %354 = vmatpush1.msra.mxu0 %v310
          %355 = vmatprep.subr.mxu0 %v317
          %356 = vmatpush1.msra.mxu0 %v316
          %357 = vmatprep.subr.mxu0 %v323
          %358 = vmatpush1.msra.mxu0 %v322
          %359 = vmatprep.subr.mxu0 %v329
          %360 = vmatpush1.msra.mxu0 %v328
          %361 = vmatprep.subr.mxu0 %v335
          %362 = vmatpush1.msra.mxu0 %v334
          %363 = vmatprep.subr.mxu0 0.0
          %364 = vmatpush1.msra.mxu0 0.0
          %365 = vmatprep.subr.mxu0 0.0
          %366 = vmatpush1.msra.mxu0 0.0
          %367 = vmatprep.subr.mxu0 0.0
          %368 = vmatpush1.msra.mxu0 0.0
          %369 = vmatprep.subr.mxu0 0.0
          %370 = vmatpush1.msra.mxu0 0.0
          %371 = vmatprep.subr.mxu0 0.0
          %372 = vmatpush1.msra.mxu0 0.0
          %373 = vmatprep.subr.mxu0 0.0
          %374 = vmatpush1.msra.mxu0 0.0
          %375 = vmatprep.subr.mxu0 0.0
          %376 = vmatpush1.msra.mxu0 0.0
          %377 = vmatprep.subr.mxu0 0.0
          %378 = vmatpush1.msra.mxu0 0.0
          %379 = vmatprep.subr.mxu0 0.0
          %380 = vmatpush1.msra.mxu0 0.0
          %381 = vmatprep.subr.mxu0 0.0
          %382 = vmatpush1.msra.mxu0 0.0
          %383 = vmatprep.subr.mxu0 0.0
          %384 = vmatpush1.msra.mxu0 0.0
          %385 = vmatprep.subr.mxu0 0.0
          %386 = vmatpush1.msra.mxu0 0.0
          %387 = vmatprep.subr.mxu0 0.0
          %388 = vmatpush1.msra.mxu0 0.0
          %389 = vmatprep.subr.mxu0 0.0
          %390 = vmatpush1.msra.mxu0 0.0
          %391 = vmatprep.subr.mxu0 0.0
          %392 = vmatpush1.msra.mxu0 0.0
          %393 = vmatprep.subr.mxu0 0.0
          %394 = vmatpush1.msra.mxu0 0.0
          %395 = vmatprep.subr.mxu0 0.0
          %396 = vmatpush1.msra.mxu0 0.0
          %397 = vmatprep.subr.mxu0 0.0
          %398 = vmatpush1.msra.mxu0 0.0
          %399 = vmatprep.subr.mxu0 0.0
          %400 = vmatpush1.msra.mxu0 0.0
          %401 = vmatprep.subr.mxu0 0.0
          %402 = vmatpush1.msra.mxu0 0.0
          %403 = vmatprep.subr.mxu0 0.0
          %404 = vmatpush1.msra.mxu0 0.0
          %405 = vmatprep.subr.mxu0 0.0
          %406 = vmatpush1.msra.mxu0 0.0
          %407 = vmatprep.subr.mxu0 0.0
          %408 = vmatpush1.msra.mxu0 0.0
          %409 = vmatprep.subr.mxu0 0.0
          %410 = vmatpush1.msra.mxu0 0.0
          %411 = vmatprep.mubr.f32.mxu0 0.0
          %412 = vmatmul.mubr.f32.gmra.mrb[0].mxu0 %v342
          %v413 = vpop.f32.mrb[0].mxu0
          %v414 = vadd.f32 0.0, %v413
          %v415 = vpop.f32.mrb[0].mxu0
          %v416 = vadd.f32 0.0, %v415
          %417 = vmatprep.mubr.f32.mxu0 0.0
          %418 = vmatmul.mubr.f32.gmra.mrb[0].mxu0 %v345
          %v419 = vpop.f32.mrb[0].mxu0
          %v420 = vadd.f32 0.0, %v419
          %v421 = vpop.f32.mrb[0].mxu0
          %v422 = vadd.f32 0.0, %v421
          %423 = vdwg.mxu0
          %424 = vmatprep.subr.mxu0 %v295
          %425 = vmatpush1.msra.mxu0 %v294
          %426 = vmatprep.subr.mxu0 %v301
          %427 = vmatpush1.msra.mxu0 %v300
          %428 = vmatprep.subr.mxu0 %v307
          %429 = vmatpush1.msra.mxu0 %v306
          %430 = vmatprep.subr.mxu0 %v313
          %431 = vmatpush1.msra.mxu0 %v312
          %432 = vmatprep.subr.mxu0 %v319
          %433 = vmatpush1.msra.mxu0 %v318
          %434 = vmatprep.subr.mxu0 %v325
          %435 = vmatpush1.msra.mxu0 %v324
          %436 = vmatprep.subr.mxu0 %v331
          %437 = vmatpush1.msra.mxu0 %v330
          %438 = vmatprep.subr.mxu0 %v337
          %439 = vmatpush1.msra.mxu0 %v336
          %440 = vmatprep.subr.mxu0 0.0
          %441 = vmatpush1.msra.mxu0 0.0
          %442 = vmatprep.subr.mxu0 0.0
          %443 = vmatpush1.msra.mxu0 0.0
          %444 = vmatprep.subr.mxu0 0.0
          %445 = vmatpush1.msra.mxu0 0.0
          %446 = vmatprep.subr.mxu0 0.0
          %447 = vmatpush1.msra.mxu0 0.0
          %448 = vmatprep.subr.mxu0 0.0
          %449 = vmatpush1.msra.mxu0 0.0
          %450 = vmatprep.subr.mxu0 0.0
          %451 = vmatpush1.msra.mxu0 0.0
          %452 = vmatprep.subr.mxu0 0.0
          %453 = vmatpush1.msra.mxu0 0.0
          %454 = vmatprep.subr.mxu0 0.0
          %455 = vmatpush1.msra.mxu0 0.0
          %456 = vmatprep.subr.mxu0 0.0
          %457 = vmatpush1.msra.mxu0 0.0
          %458 = vmatprep.subr.mxu0 0.0
          %459 = vmatpush1.msra.mxu0 0.0
          %460 = vmatprep.subr.mxu0 0.0
          %461 = vmatpush1.msra.mxu0 0.0
          %462 = vmatprep.subr.mxu0 0.0
          %463 = vmatpush1.msra.mxu0 0.0
          %464 = vmatprep.subr.mxu0 0.0
          %465 = vmatpush1.msra.mxu0 0.0
          %466 = vmatprep.subr.mxu0 0.0
          %467 = vmatpush1.msra.mxu0 0.0
          %468 = vmatprep.subr.mxu0 0.0
          %469 = vmatpush1.msra.mxu0 0.0
          %470 = vmatprep.subr.mxu0 0.0
          %471 = vmatpush1.msra.mxu0 0.0
          %472 = vmatprep.subr.mxu0 0.0
          %473 = vmatpush1.msra.mxu0 0.0
          %474 = vmatprep.subr.mxu0 0.0
          %475 = vmatpush1.msra.mxu0 0.0
          %476 = vmatprep.subr.mxu0 0.0
          %477 = vmatpush1.msra.mxu0 0.0
          %478 = vmatprep.subr.mxu0 0.0
          %479 = vmatpush1.msra.mxu0 0.0
          %480 = vmatprep.subr.mxu0 0.0
          %481 = vmatpush1.msra.mxu0 0.0
          %482 = vmatprep.subr.mxu0 0.0
          %483 = vmatpush1.msra.mxu0 0.0
          %484 = vmatprep.subr.mxu0 0.0
          %485 = vmatpush1.msra.mxu0 0.0
          %486 = vmatprep.subr.mxu0 0.0
          %487 = vmatpush1.msra.mxu0 0.0
          %488 = vmatprep.mubr.f32.mxu0 0.0
          %489 = vmatmul.mubr.f32.gmra.mrb[0].mxu0 %v342
          %v490 = vpop.f32.mrb[0].mxu0
          %v491 = vadd.f32 0.0, %v490
          %v492 = vpop.f32.mrb[0].mxu0
          %v493 = vadd.f32 0.0, %v492
          %494 = vmatprep.mubr.f32.mxu0 0.0
          %495 = vmatmul.mubr.f32.gmra.mrb[0].mxu0 %v345
          %v496 = vpop.f32.mrb[0].mxu0
          %v497 = vadd.f32 0.0, %v496
          %v498 = vpop.f32.mrb[0].mxu0
          %v499 = vadd.f32 0.0, %v498
          %500 = vdwg.mxu0
          %501 = vmatprep.subr.mxu0 %v297
          %502 = vmatpush1.msra.mxu0 %v296
          %503 = vmatprep.subr.mxu0 %v303
          %504 = vmatpush1.msra.mxu0 %v302
          %505 = vmatprep.subr.mxu0 %v309
          %506 = vmatpush1.msra.mxu0 %v308
          %507 = vmatprep.subr.mxu0 %v315
          %508 = vmatpush1.msra.mxu0 %v314
          %509 = vmatprep.subr.mxu0 %v321
          %510 = vmatpush1.msra.mxu0 %v320
          %511 = vmatprep.subr.mxu0 %v327
          %512 = vmatpush1.msra.mxu0 %v326
          %513 = vmatprep.subr.mxu0 %v333
          %514 = vmatpush1.msra.mxu0 %v332
          %515 = vmatprep.subr.mxu0 %v339
          %516 = vmatpush1.msra.mxu0 %v338
          %517 = vmatprep.subr.mxu0 0.0
          %518 = vmatpush1.msra.mxu0 0.0
          %519 = vmatprep.subr.mxu0 0.0
          %520 = vmatpush1.msra.mxu0 0.0
          %521 = vmatprep.subr.mxu0 0.0
          %522 = vmatpush1.msra.mxu0 0.0
          %523 = vmatprep.subr.mxu0 0.0
          %524 = vmatpush1.msra.mxu0 0.0
          %525 = vmatprep.subr.mxu0 0.0
          %526 = vmatpush1.msra.mxu0 0.0
          %527 = vmatprep.subr.mxu0 0.0
          %528 = vmatpush1.msra.mxu0 0.0
          %529 = vmatprep.subr.mxu0 0.0
          %530 = vmatpush1.msra.mxu0 0.0
          %531 = vmatprep.subr.mxu0 0.0
          %532 = vmatpush1.msra.mxu0 0.0
          %533 = vmatprep.subr.mxu0 0.0
          %534 = vmatpush1.msra.mxu0 0.0
          %535 = vmatprep.subr.mxu0 0.0
          %536 = vmatpush1.msra.mxu0 0.0
          %537 = vmatprep.subr.mxu0 0.0
          %538 = vmatpush1.msra.mxu0 0.0
          %539 = vmatprep.subr.mxu0 0.0
          %540 = vmatpush1.msra.mxu0 0.0
          %541 = vmatprep.subr.mxu0 0.0
          %542 = vmatpush1.msra.mxu0 0.0
          %543 = vmatprep.subr.mxu0 0.0
          %544 = vmatpush1.msra.mxu0 0.0
          %545 = vmatprep.subr.mxu0 0.0
          %546 = vmatpush1.msra.mxu0 0.0
          %547 = vmatprep.subr.mxu0 0.0
          %548 = vmatpush1.msra.mxu0 0.0
          %549 = vmatprep.subr.mxu0 0.0
          %550 = vmatpush1.msra.mxu0 0.0
          %551 = vmatprep.subr.mxu0 0.0
          %552 = vmatpush1.msra.mxu0 0.0
          %553 = vmatprep.subr.mxu0 0.0
          %554 = vmatpush1.msra.mxu0 0.0
          %555 = vmatprep.subr.mxu0 0.0
          %556 = vmatpush1.msra.mxu0 0.0
          %557 = vmatprep.subr.mxu0 0.0
          %558 = vmatpush1.msra.mxu0 0.0
          %559 = vmatprep.subr.mxu0 0.0
          %560 = vmatpush1.msra.mxu0 0.0
          %561 = vmatprep.subr.mxu0 0.0
          %562 = vmatpush1.msra.mxu0 0.0
          %563 = vmatprep.subr.mxu0 0.0
          %564 = vmatpush1.msra.mxu0 0.0
          %565 = vmatprep.mubr.f32.mxu0 0.0
          %566 = vmatmul.mubr.f32.gmra.mrb[0].mxu0 %v342
          %v567 = vpop.f32.mrb[0].mxu0
          %v568 = vadd.f32 0.0, %v567
          %v569 = vpop.f32.mrb[0].mxu0
          %v570 = vadd.f32 0.0, %v569
          %571 = vmatprep.mubr.f32.mxu0 0.0
          %572 = vmatmul.mubr.f32.gmra.mrb[0].mxu0 %v345
          %v573 = vpop.f32.mrb[0].mxu0
          %v574 = vadd.f32 0.0, %v573
          %v575 = vpop.f32.mrb[0].mxu0
          %v576 = vadd.f32 0.0, %v575
          %577 = vdwg.mxu0
          %578 = vst [vmem:[#allocation2] sm:$0xff] %v414
          %579 = vst [vmem:[#allocation2 + $0x8] sm:$0xff] %v416
          %580 = vst [vmem:[#allocation2 + $0x10] sm:$0xff] %v420
          %581 = vst [vmem:[#allocation2 + $0x18] sm:$0xff] %v422
          %582 = vst [vmem:[#allocation2 + $0x20] sm:$0xff] %v491
          %583 = vst [vmem:[#allocation2 + $0x28] sm:$0xff] %v493
          %584 = vst [vmem:[#allocation2 + $0x30] sm:$0xff] %v497
          %585 = vst [vmem:[#allocation2 + $0x38] sm:$0xff] %v499
          %586 = vst [vmem:[#allocation2 + $0x40] sm:$0xff] %v568
          %587 = vst [vmem:[#allocation2 + $0x48] sm:$0xff] %v570
          %588 = vst [vmem:[#allocation2 + $0x50] sm:$0xff] %v574
          %589 = vst [vmem:[#allocation2 + $0x58] sm:$0xff] %v576
        $region52: #{tpu_custom_call.1} parent=35 // pred_fallthru
          _
        %v590 = vld [vmem:[%s250] sm:$0xff]
        %v591 = vld [vmem:[%s250 + $0x8] sm:$0xff]
        %v592 = vld [vmem:[#allocation2] sm:$0xff]
        %v593 = vld [vmem:[#allocation2 + $0x8] sm:$0xff]
        %v594 = vld [vmem:[#allocation2 + $0x10] sm:$0xff]
        %v595 = vld [vmem:[#allocation2 + $0x18] sm:$0xff]
        %v596 = vld [vmem:[#allocation2 + $0x20] sm:$0xff]
        %v597 = vld [vmem:[#allocation2 + $0x28] sm:$0xff]
        %v598 = vld [vmem:[#allocation2 + $0x30] sm:$0xff]
        %v599 = vld [vmem:[#allocation2 + $0x38] sm:$0xff]
        %v600 = vld [vmem:[#allocation2 + $0x40] sm:$0xff]
        %v601 = vld [vmem:[#allocation2 + $0x48] sm:$0xff]
        %v602 = vld [vmem:[#allocation2 + $0x50] sm:$0xff]
        %v603 = vld [vmem:[#allocation2 + $0x58] sm:$0xff]
        %v604 = vld [vmem:[%s3] sm:$0x3]
        %v606 = vlaneseq
        %v607 = vshrl.u32 %v606, 7
        %v608 = vsub.s32 0, %v607
        %v609 = vrot.slane %v604, %v608
        %v610 = vlaneseq
        %v611 = vshrl.u32 %v610, 7
        %v612 = vsub.s32 1, %v611
        %v613 = vrot.slane %v604, %v612
        %vm616 = vcmask 392192
        %v618 = vsel %vm616, %v590, 0
        %v621 = vsel %vm616, %v591, 0
        %623 = vmatprep.subr.mxu0 %v593
        %624 = vmatpush1.msra.mxu0 %v592
        %625 = vmatprep.subr.mxu0 %v595
        %626 = vmatpush1.msra.mxu0 %v594
        %627 = vmatprep.subr.mxu0 %v597
        %628 = vmatpush1.msra.mxu0 %v596
        %629 = vmatprep.subr.mxu0 %v599
        %630 = vmatpush1.msra.mxu0 %v598
        %631 = vmatprep.subr.mxu0 %v601
        %632 = vmatpush1.msra.mxu0 %v600
        %633 = vmatprep.subr.mxu0 %v603
        %634 = vmatpush1.msra.mxu0 %v602
        %635 = vmatprep.subr.mxu0 0.0
        %636 = vmatpush1.msra.mxu0 0.0
        %637 = vmatprep.subr.mxu0 0.0
        %638 = vmatpush1.msra.mxu0 0.0
        %639 = vmatprep.subr.mxu0 0.0
        %640 = vmatpush1.msra.mxu0 0.0
        %641 = vmatprep.subr.mxu0 0.0
        %642 = vmatpush1.msra.mxu0 0.0
        %643 = vmatprep.subr.mxu0 0.0
        %644 = vmatpush1.msra.mxu0 0.0
        %645 = vmatprep.subr.mxu0 0.0
        %646 = vmatpush1.msra.mxu0 0.0
        %647 = vmatprep.subr.mxu0 0.0
        %648 = vmatpush1.msra.mxu0 0.0
        %649 = vmatprep.subr.mxu0 0.0
        %650 = vmatpush1.msra.mxu0 0.0
        %651 = vmatprep.subr.mxu0 0.0
        %652 = vmatpush1.msra.mxu0 0.0
        %653 = vmatprep.subr.mxu0 0.0
        %654 = vmatpush1.msra.mxu0 0.0
        %655 = vmatprep.subr.mxu0 0.0
        %656 = vmatpush1.msra.mxu0 0.0
        %657 = vmatprep.subr.mxu0 0.0
        %658 = vmatpush1.msra.mxu0 0.0
        %659 = vmatprep.subr.mxu0 0.0
        %660 = vmatpush1.msra.mxu0 0.0
        %661 = vmatprep.subr.mxu0 0.0
        %662 = vmatpush1.msra.mxu0 0.0
        %663 = vmatprep.subr.mxu0 0.0
        %664 = vmatpush1.msra.mxu0 0.0
        %665 = vmatprep.subr.mxu0 0.0
        %666 = vmatpush1.msra.mxu0 0.0
        %667 = vmatprep.subr.mxu0 0.0
        %668 = vmatpush1.msra.mxu0 0.0
        %669 = vmatprep.subr.mxu0 0.0
        %670 = vmatpush1.msra.mxu0 0.0
        %671 = vmatprep.subr.mxu0 0.0
        %672 = vmatpush1.msra.mxu0 0.0
        %673 = vmatprep.subr.mxu0 0.0
        %674 = vmatpush1.msra.mxu0 0.0
        %675 = vmatprep.subr.mxu0 0.0
        %676 = vmatpush1.msra.mxu0 0.0
        %677 = vmatprep.subr.mxu0 0.0
        %678 = vmatpush1.msra.mxu0 0.0
        %679 = vmatprep.subr.mxu0 0.0
        %680 = vmatpush1.msra.mxu0 0.0
        %681 = vmatprep.subr.mxu0 0.0
        %682 = vmatpush1.msra.mxu0 0.0
        %683 = vmatprep.subr.mxu0 0.0
        %684 = vmatpush1.msra.mxu0 0.0
        %685 = vmatprep.subr.mxu0 0.0
        %686 = vmatpush1.msra.mxu0 0.0
        %687 = vmatprep.mubr.f32.mxu0 0.0
        %688 = vmatmul.mubr.f32.gmra.mrb[0].mxu0 %v618
        %v689 = vpop.f32.mrb[0].mxu0
        %v690 = vadd.f32 %v609, %v689
        %v691 = vpop.f32.mrb[0].mxu0
        %v692 = vadd.f32 %v613, %v691
        %693 = vmatprep.mubr.f32.mxu0 0.0
        %694 = vmatmul.mubr.f32.gmra.mrb[0].mxu0 %v621
        %v695 = vpop.f32.mrb[0].mxu0
        %v696 = vadd.f32 %v609, %v695
        %v697 = vpop.f32.mrb[0].mxu0
        %v698 = vadd.f32 %v613, %v697
        %699 = vdwg.mxu0
        %v700 = vmax.f32 %v690, 0.0
        %v701 = vmax.f32 %v692, 0.0
        %v702 = vmax.f32 %v696, 0.0
        %v703 = vmax.f32 %v698, 0.0
        %704 = vst [vmem:[%s283] sm:$0xff] %v700
        %705 = vst [vmem:[%s283 + $0x8] sm:$0xff] %v701
        %706 = vst [vmem:[%s283 + $0x10] sm:$0xff] %v702
        %707 = vst [vmem:[%s283 + $0x18] sm:$0xff] %v703
        %s708 = sand.u32 %s140, 1
        %s709 = scalar_lea.sflag [#allocation5], %s708
        %s710 = sand.u32 %s140, 1
        %s711 = smul.addr %s710, 32
        %s712 = scalar_lea.vmem [#allocation9], %s711
        // Predicated region
        $region53: #{tpu_custom_call.1} parent=35 // pred_check
          %p713 = pneg %p150
        $region54: #{tpu_custom_call.1} parent=35 // pred_check_branch
          %715 = sbr.rel (%p713) target = $region56
        $region55: #{tpu_custom_call.1} parent=35 // pred_region
          %s716 = smul.u32 2, %s29
          %s718 = ssub.s32 512, 512
          %719 = vsyncadd %s709, %s718
          %s720 = smul.addr %s716, 2
          %s721 = smul.addr %s28, 8
          %s722 = sadd.s32 %s720, %s721
          %s723 = smul.addr %s722, 128
          %s724 = scalar_lea.hbm %s4, %s723
          %s725 = sshll.u32 %s712, 4
          %s726 = int_to_ptr.vmem [resolvable:$true] %s725
          %731 = dma.vmem_to_hbm [thread:$0]  %s726, 512, %s724, %s709, 256, 256, 16
        $region56: #{tpu_custom_call.1} parent=35 // pred_fallthru
          _
      $region36: #{tpu_custom_call.1} parent=5 // pred_fallthru
        _
      %p732 = scmp.le.s32.totalorder 2, %s19
      // Predicated region
      $region57: #{tpu_custom_call.1} parent=5 // pred_check
        %p733 = pneg %p732
      $region58: #{tpu_custom_call.1} parent=5 // pred_check_branch
        %735 = sbr.rel (%p733) target = $region60
      $region59: #{tpu_custom_call.1} parent=5 // pred_region
        %s736 = ssub.s32 %s19, 2
        // Predicated region
        $region61: #{tpu_custom_call.1} parent=59 // pred_check
          %p737 = pneg %p156
        $region62: #{tpu_custom_call.1} parent=59 // pred_check_branch
          %739 = sbr.rel (%p737) target = $region64
        $region63: #{tpu_custom_call.1} parent=59 // pred_region
          %s740 = sand.u32 %s141, 1
          %s741 = scalar_lea.sflag [#allocation5], %s740
          %s742 = sand.u32 %s141, 1
          %s743 = smul.addr %s742, 32
          %s744 = scalar_lea.vmem [#allocation9], %s743
          %745 = dma.done %s741, 512
        $region64: #{tpu_custom_call.1} parent=59 // pred_fallthru
          _
      $region60: #{tpu_custom_call.1} parent=5 // pred_fallthru
        _
    $region6: #{tpu_custom_call.1} parent=1 // loop_footer
      %s23 = sadd.s32 1, %s19
    $region7: #{tpu_custom_call.1} parent=1 // loop_footer_branch
      %18 = sbr.rel target = $region3
    $region8: #{tpu_custom_call.1} parent=1 // loop_exit
      _
    %746 = vsyncpa [#allocation4], 1
    %s747 = scalar_lea.sflag [#allocation4], 1
    %748 = vsyncpa %s747, 1
    %749 = vsyncpa [#allocation7], 1
    %s750 = scalar_lea.sflag [#allocation7], 1
    %751 = vsyncpa %s750, 1
    %752 = vsyncpa [#allocation5], 1
    %s753 = scalar_lea.sflag [#allocation5], 1
    %754 = vsyncpa %s753, 1

</llo_original>
